<compile_context>
chip_gen: v6e
topology: v6e:2x2x1
jax: 0.10.0
libtpu: 0.0.40
codegen_flags: <defaults>
</compile_context>

<pallas_src>
import functools

import jax
import jax.numpy as jnp
from jax.experimental import pallas as pl
from jax.experimental.pallas import tpu as pltpu

# ----- small, forward-consistent dimensions -----
OUTPUT_DIM = 16   # vocab size (len(ye_vocab) surrogate)
EMB_DIM = 32
HID_DIM = 32
N_LAYERS = 2
BATCH = 8         # fills all 8 sublanes of a vreg
SEQ = 8           # number of decode steps fused into one kernel invocation
FC_PAD = 128      # lane-dense padded fc_out width (>= OUTPUT_DIM)


def decoder_seq_kernel(x_gates_ref,            # (SEQ, B, 4H) = (emb @ W_ih0 + b0)[tokens]
                       h_init_ref, c_init_ref,  # (N_LAYERS, B, H) initial state
                       whh0_ref,                # (H, 4H)
                       wih1_ref, whh1_ref,      # (H, 4H), (H, 4H)
                       b1_ref,                  # (1, 4H)
                       wfc_ref, bfc_ref,        # (H, FC_PAD), (1, FC_PAD)
                       pred_ref,                # (SEQ*B, FC_PAD) output
                       h_out_ref, c_out_ref,    # (N_LAYERS, B, H) final state
                       h1_all_ref,              # scratch (SEQ*B, H)
                       *, seq_len):
    H = HID_DIM

    def gate_act(gates, c):
        # Two full-128-lane EUP ops (one sigmoid, one tanh) over the whole (B, 4H)
        # gate block instead of four partial-lane activations.
        sig = jax.nn.sigmoid(gates)
        th = jnp.tanh(gates)
        i = sig[:, 0 * H:1 * H]
        f = sig[:, 1 * H:2 * H]
        g = th[:, 2 * H:3 * H]
        o = sig[:, 3 * H:4 * H]
        c_new = f * c + i * g
        h_new = o * jnp.tanh(c_new)
        return h_new, c_new

    # Hoist weight loads and the b1 sublane-broadcast out of the step loop.
    whh0 = whh0_ref[...]
    wih1 = wih1_ref[...]
    whh1 = whh1_ref[...]
    b1 = jnp.broadcast_to(b1_ref[...], (BATCH, 4 * H))

    h0 = h_init_ref[0]
    c0 = c_init_ref[0]
    h1 = h_init_ref[1]
    c1 = c_init_ref[1]

    # Fully-unrolled sequential recurrence (static trip count & indices); the tiny
    # (B, H) carries keep live ranges negligible.
    for t in range(seq_len):
        # ---- layer 0: embedding gather + input matmul + bias already folded into x_gates ----
        gates0 = x_gates_ref[t] + jnp.dot(h0, whh0, preferred_element_type=jnp.float32)
        h0, c0 = gate_act(gates0, c0)

        # ---- layer 1: two small MXU issues; the h1-recurrent term is independent of h0 ----
        gates1 = (jnp.dot(h0, wih1, preferred_element_type=jnp.float32)
                  + jnp.dot(h1, whh1, preferred_element_type=jnp.float32)
                  + b1)
        h1, c1 = gate_act(gates1, c1)

        # Stash top-layer hidden; fc_out is batched over all steps after the loop.
        h1_all_ref[t * BATCH:(t + 1) * BATCH, :] = h1

    h_out_ref[0] = h0
    h_out_ref[1] = h1
    c_out_ref[0] = c0
    c_out_ref[1] = c1

    # Single batched fc projection + one lane-dense (128-wide) store.
    pred_ref[...] = (jnp.dot(h1_all_ref[...], wfc_ref[...],
                             preferred_element_type=jnp.float32)
                     + bfc_ref[...])


@functools.lru_cache(maxsize=None)
def _decode_call(seq_len):
    vmem_spec = functools.partial(pl.BlockSpec, memory_space=pltpu.MemorySpace.VMEM)
    return pl.pallas_call(
        functools.partial(decoder_seq_kernel, seq_len=seq_len),
        out_shape=(
            jax.ShapeDtypeStruct((seq_len * BATCH, FC_PAD), jnp.float32),
            jax.ShapeDtypeStruct((N_LAYERS, BATCH, HID_DIM), jnp.float32),
            jax.ShapeDtypeStruct((N_LAYERS, BATCH, HID_DIM), jnp.float32),
        ),
        # No grid: single invocation; every operand is a whole-array VMEM block.
        in_specs=[vmem_spec()] * 9,
        out_specs=(vmem_spec(), vmem_spec(), vmem_spec()),
        scratch_shapes=[pltpu.VMEM((seq_len * BATCH, HID_DIM), jnp.float32)],
    )


@jax.jit
def decoder_decode(kparams, tokens, hidden, cell):
    """tokens: (SEQ, B) int32; hidden/cell: (N_LAYERS, B, H) f32.

    Runs SEQ teacher-forced Decoder.forward() steps in one fused kernel.
    (SEQ == 1 reproduces the original single-step forward.)
    """
    seq_len = tokens.shape[0]
    # Tiny-table gather fused with the layer-0 input matmul (+ folded bias), done once
    # outside the kernel: x_gates[t, b] = emb[tok[t, b]] @ W_ih0 + b0.
    x_gates = kparams["gate_tab"][tokens]                       # (SEQ, B, 4H) f32
    pred_pad, h_new, c_new = _decode_call(seq_len)(
        x_gates, hidden, cell,
        kparams["whh0"],
        kparams["wih1"], kparams["whh1"], kparams["b1"],
        kparams["wfc_pad"], kparams["bfc_pad"])
    pred = pred_pad.reshape(seq_len, BATCH, FC_PAD)[..., :OUTPUT_DIM]
    return pred, h_new, c_new


# ----------------------------- parameters -----------------------------
def make_params(key):
    ks = jax.random.split(key, 10)
    s = 0.1
    return {
        "emb":  s * jax.random.normal(ks[0], (OUTPUT_DIM, EMB_DIM), jnp.float32),
        # layer 0 (input EMB_DIM); weights stored pre-transposed (in, out); gate order i,f,g,o
        "wih0": s * jax.random.normal(ks[1], (EMB_DIM, 4 * HID_DIM), jnp.float32),
        "whh0": s * jax.random.normal(ks[2], (HID_DIM, 4 * HID_DIM), jnp.float32),
        "b0":   s * jax.random.normal(ks[3], (1, 4 * HID_DIM), jnp.float32),  # b_ih + b_hh folded
        # layer 1 (input HID_DIM)
        "wih1": s * jax.random.normal(ks[4], (HID_DIM, 4 * HID_DIM), jnp.float32),
        "whh1": s * jax.random.normal(ks[5], (HID_DIM, 4 * HID_DIM), jnp.float32),
        "b1":   s * jax.random.normal(ks[6], (1, 4 * HID_DIM), jnp.float32),
        # fc_out
        "wfc":  s * jax.random.normal(ks[7], (HID_DIM, OUTPUT_DIM), jnp.float32),
        "bfc":  s * jax.random.normal(ks[8], (1, OUTPUT_DIM), jnp.float32),
    }


def prepare_kernel_params(raw):
    """Pre-fuse/pad weights for the kernel (done once, outside the decode loop)."""
    wfc_pad = jnp.zeros((HID_DIM, FC_PAD), jnp.float32).at[:, :OUTPUT_DIM].set(raw["wfc"])
    bfc_pad = jnp.zeros((1, FC_PAD), jnp.float32).at[:, :OUTPUT_DIM].set(raw["bfc"])
    # 2-D gate table with the layer-0 bias folded in:
    #   (E @ W_ih0 + b0)[tok] == emb[tok] @ W_ih0 + b0   (dropout == identity in eval mode)
    gate_tab = (jnp.dot(raw["emb"], raw["wih0"], precision=jax.lax.Precision.HIGHEST)
                + raw["b0"])                                    # (V, 4H)
    return {
        "gate_tab": gate_tab,
        "whh0": raw["whh0"],
        "wih1": raw["wih1"], "whh1": raw["whh1"], "b1": raw["b1"],
        "wfc_pad": wfc_pad, "bfc_pad": bfc_pad,
    }


# ----------------------------- pure-JAX reference -----------------------------
def reference_decode(raw, tokens, hidden, cell):
    H = HID_DIM

    def cell_step(x, h, c, wih, whh, b):
        g = x @ wih + h @ whh + b
        i = jax.nn.sigmoid(g[:, 0 * H:1 * H])
        f = jax.nn.sigmoid(g[:, 1 * H:2 * H])
        gg = jnp.tanh(g[:, 2 * H:3 * H])
        o = jax.nn.sigmoid(g[:, 3 * H:4 * H])
        c2 = f * c + i * gg
        return o * jnp.tanh(c2), c2

    preds = []
    h, c = hidden, cell
    for t in range(tokens.shape[0]):
        x = raw["emb"][tokens[t]]                               # dropout == identity (eval)
        h0n, c0n = cell_step(x, h[0], c[0], raw["wih0"], raw["whh0"], raw["b0"])
        h1n, c1n = cell_step(h0n, h[1], c[1], raw["wih1"], raw["whh1"], raw["b1"])
        h = jnp.stack([h0n, h1n])
        c = jnp.stack([c0n, c1n])
        preds.append(h1n @ raw["wfc"] + raw["bfc"])
    return jnp.stack(preds), h, c


if __name__ == "__main__":
    key = jax.random.PRNGKey(0)
    kp, kt, kh, kc = jax.random.split(key, 4)

    raw = make_params(kp)
    kparams = prepare_kernel_params(raw)

    tokens = jax.random.randint(kt, (SEQ, BATCH), 0, OUTPUT_DIM, dtype=jnp.int32)
    hidden = 0.1 * jax.random.normal(kh, (N_LAYERS, BATCH, HID_DIM), jnp.float32)
    cell = 0.1 * jax.random.normal(kc, (N_LAYERS, BATCH, HID_DIM), jnp.float32)

    pred, h_new, c_new = decoder_decode(kparams, tokens, hidden, cell)
    jax.block_until_ready((pred, h_new, c_new))

    ref_pred, ref_h, ref_c = reference_decode(raw, tokens, hidden, cell)

    assert pred.shape == (SEQ, BATCH, OUTPUT_DIM)
    assert h_new.shape == (N_LAYERS, BATCH, HID_DIM)
    assert c_new.shape == (N_LAYERS, BATCH, HID_DIM)
    assert bool(jnp.all(jnp.isfinite(pred)))
    assert bool(jnp.allclose(pred, ref_pred, atol=1e-2, rtol=1e-2))
    assert bool(jnp.allclose(h_new, ref_h, atol=1e-2, rtol=1e-2))
    assert bool(jnp.allclose(c_new, ref_c, atol=1e-2, rtol=1e-2))

    print("KERNEL_OK")
</pallas_src>

<mosaic_0001>
module attributes {stable_mosaic.version = 11 : i64} {
  func.func @decoder_seq_kernel(%arg0: memref<8x8x128xf32, #tpu.memory_space<vmem>>, %arg1: memref<2x8x32xf32, #tpu.memory_space<vmem>>, %arg2: memref<2x8x32xf32, #tpu.memory_space<vmem>>, %arg3: memref<32x128xf32, #tpu.memory_space<vmem>>, %arg4: memref<32x128xf32, #tpu.memory_space<vmem>>, %arg5: memref<32x128xf32, #tpu.memory_space<vmem>>, %arg6: memref<1x128xf32, #tpu.memory_space<vmem>>, %arg7: memref<32x128xf32, #tpu.memory_space<vmem>>, %arg8: memref<1x128xf32, #tpu.memory_space<vmem>>, %arg9: memref<64x128xf32, #tpu.memory_space<vmem>>, %arg10: memref<2x8x32xf32, #tpu.memory_space<vmem>>, %arg11: memref<2x8x32xf32, #tpu.memory_space<vmem>>, %arg12: memref<64x32xf32, #tpu.memory_space<vmem>>) attributes {dimension_semantics = [], scalar_prefetch = 0 : i64, scratch_operands = 1 : i64, tpu.core_type = #tpu.core_type<tc>} {
    %c0 = arith.constant 0 : index
    %c0_0 = arith.constant 0 : index
    %0 = vector.load %arg3[%c0, %c0_0] : memref<32x128xf32, #tpu.memory_space<vmem>>, vector<32x128xf32>
    %c0_1 = arith.constant 0 : index
    %c0_2 = arith.constant 0 : index
    %1 = vector.load %arg4[%c0_1, %c0_2] : memref<32x128xf32, #tpu.memory_space<vmem>>, vector<32x128xf32>
    %c0_3 = arith.constant 0 : index
    %c0_4 = arith.constant 0 : index
    %2 = vector.load %arg5[%c0_3, %c0_4] : memref<32x128xf32, #tpu.memory_space<vmem>>, vector<32x128xf32>
    %c0_5 = arith.constant 0 : index
    %c0_6 = arith.constant 0 : index
    %3 = vector.load %arg6[%c0_5, %c0_6] : memref<1x128xf32, #tpu.memory_space<vmem>>, vector<1x128xf32>
    %4 = vector.shape_cast %3 : vector<1x128xf32> to vector<1x128xf32>
    %5 = vector.broadcast %4 : vector<1x128xf32> to vector<8x128xf32>
    %c0_7 = arith.constant 0 : index
    %c0_8 = arith.constant 0 : index
    %c0_9 = arith.constant 0 : index
    %6 = vector.load %arg1[%c0_7, %c0_8, %c0_9] : memref<2x8x32xf32, #tpu.memory_space<vmem>>, vector<1x8x32xf32>
    %7 = vector.shape_cast %6 : vector<1x8x32xf32> to vector<8x32xf32>
    %c0_10 = arith.constant 0 : index
    %c0_11 = arith.constant 0 : index
    %c0_12 = arith.constant 0 : index
    %8 = vector.load %arg2[%c0_10, %c0_11, %c0_12] : memref<2x8x32xf32, #tpu.memory_space<vmem>>, vector<1x8x32xf32>
    %9 = vector.shape_cast %8 : vector<1x8x32xf32> to vector<8x32xf32>
    %c1 = arith.constant 1 : index
    %c0_13 = arith.constant 0 : index
    %c0_14 = arith.constant 0 : index
    %10 = vector.load %arg1[%c1, %c0_13, %c0_14] : memref<2x8x32xf32, #tpu.memory_space<vmem>>, vector<1x8x32xf32>
    %11 = vector.shape_cast %10 : vector<1x8x32xf32> to vector<8x32xf32>
    %c1_15 = arith.constant 1 : index
    %c0_16 = arith.constant 0 : index
    %c0_17 = arith.constant 0 : index
    %12 = vector.load %arg2[%c1_15, %c0_16, %c0_17] : memref<2x8x32xf32, #tpu.memory_space<vmem>>, vector<1x8x32xf32>
    %13 = vector.shape_cast %12 : vector<1x8x32xf32> to vector<8x32xf32>
    %c0_18 = arith.constant 0 : index
    %c0_19 = arith.constant 0 : index
    %c0_20 = arith.constant 0 : index
    %14 = vector.load %arg0[%c0_18, %c0_19, %c0_20] : memref<8x8x128xf32, #tpu.memory_space<vmem>>, vector<1x8x128xf32>
    %15 = vector.shape_cast %14 : vector<1x8x128xf32> to vector<8x128xf32>
    %cst = arith.constant dense<0.000000e+00> : vector<8x128xf32>
    %16 = tpu.matmul %7, %0, %cst {dimension_numbers = #tpu.dot_dimension_numbers<[1], [0], [0], [1], [0, 0, 1, 1], [], []>} : vector<8x32xf32>, vector<32x128xf32>, vector<8x128xf32> -> vector<8x128xf32>
    %17 = arith.addf %15, %16 : vector<8x128xf32>
    %18 = arith.negf %17 : vector<8x128xf32>
    %19 = math.exp %18 : vector<8x128xf32>
    %cst_21 = arith.constant 1.000000e+00 : f32
    %20 = vector.broadcast %cst_21 : f32 to vector<8x128xf32>
    %21 = arith.addf %20, %19 : vector<8x128xf32>
    %22 = arith.divf %20, %21 : vector<8x128xf32>
    %23 = math.tanh %17 : vector<8x128xf32>
    %24 = vector.extract_strided_slice %22 {offsets = [0, 0], sizes = [8, 32], strides = [1, 1]} : vector<8x128xf32> to vector<8x32xf32>
    %25 = vector.extract_strided_slice %22 {offsets = [0, 32], sizes = [8, 32], strides = [1, 1]} : vector<8x128xf32> to vector<8x32xf32>
    %26 = vector.extract_strided_slice %23 {offsets = [0, 64], sizes = [8, 32], strides = [1, 1]} : vector<8x128xf32> to vector<8x32xf32>
    %27 = vector.extract_strided_slice %22 {offsets = [0, 96], sizes = [8, 32], strides = [1, 1]} : vector<8x128xf32> to vector<8x32xf32>
    %28 = arith.mulf %25, %9 : vector<8x32xf32>
    %29 = arith.mulf %24, %26 : vector<8x32xf32>
    %30 = arith.addf %28, %29 : vector<8x32xf32>
    %31 = math.tanh %30 : vector<8x32xf32>
    %32 = arith.mulf %27, %31 : vector<8x32xf32>
    %cst_22 = arith.constant dense<0.000000e+00> : vector<8x128xf32>
    %33 = tpu.matmul %32, %1, %cst_22 {dimension_numbers = #tpu.dot_dimension_numbers<[1], [0], [0], [1], [0, 0, 1, 1], [], []>} : vector<8x32xf32>, vector<32x128xf32>, vector<8x128xf32> -> vector<8x128xf32>
    %cst_23 = arith.constant dense<0.000000e+00> : vector<8x128xf32>
    %34 = tpu.matmul %11, %2, %cst_23 {dimension_numbers = #tpu.dot_dimension_numbers<[1], [0], [0], [1], [0, 0, 1, 1], [], []>} : vector<8x32xf32>, vector<32x128xf32>, vector<8x128xf32> -> vector<8x128xf32>
    %35 = arith.addf %33, %34 : vector<8x128xf32>
    %36 = arith.addf %35, %5 : vector<8x128xf32>
    %37 = arith.negf %36 : vector<8x128xf32>
    %38 = math.exp %37 : vector<8x128xf32>
    %cst_24 = arith.constant 1.000000e+00 : f32
    %39 = vector.broadcast %cst_24 : f32 to vector<8x128xf32>
    %40 = arith.addf %39, %38 : vector<8x128xf32>
    %41 = arith.divf %39, %40 : vector<8x128xf32>
    %42 = math.tanh %36 : vector<8x128xf32>
    %43 = vector.extract_strided_slice %41 {offsets = [0, 0], sizes = [8, 32], strides = [1, 1]} : vector<8x128xf32> to vector<8x32xf32>
    %44 = vector.extract_strided_slice %41 {offsets = [0, 32], sizes = [8, 32], strides = [1, 1]} : vector<8x128xf32> to vector<8x32xf32>
    %45 = vector.extract_strided_slice %42 {offsets = [0, 64], sizes = [8, 32], strides = [1, 1]} : vector<8x128xf32> to vector<8x32xf32>
    %46 = vector.extract_strided_slice %41 {offsets = [0, 96], sizes = [8, 32], strides = [1, 1]} : vector<8x128xf32> to vector<8x32xf32>
    %47 = arith.mulf %44, %13 : vector<8x32xf32>
    %48 = arith.mulf %43, %45 : vector<8x32xf32>
    %49 = arith.addf %47, %48 : vector<8x32xf32>
    %50 = math.tanh %49 : vector<8x32xf32>
    %51 = arith.mulf %46, %50 : vector<8x32xf32>
    %c0_25 = arith.constant 0 : index
    %c0_26 = arith.constant 0 : index
    %52 = vector.load %arg12[%c0_25, %c0_26] : memref<64x32xf32, #tpu.memory_space<vmem>>, vector<8x32xf32>
    tpu.vector_store %arg12[%c0_25, %c0_26], %51 {strides = array<i32>} : memref<64x32xf32, #tpu.memory_space<vmem>>, vector<8x32xf32>,
    %c1_27 = arith.constant 1 : index
    %c0_28 = arith.constant 0 : index
    %c0_29 = arith.constant 0 : index
    %53 = vector.load %arg0[%c1_27, %c0_28, %c0_29] : memref<8x8x128xf32, #tpu.memory_space<vmem>>, vector<1x8x128xf32>
    %54 = vector.shape_cast %53 : vector<1x8x128xf32> to vector<8x128xf32>
    %cst_30 = arith.constant dense<0.000000e+00> : vector<8x128xf32>
    %55 = tpu.matmul %32, %0, %cst_30 {dimension_numbers = #tpu.dot_dimension_numbers<[1], [0], [0], [1], [0, 0, 1, 1], [], []>} : vector<8x32xf32>, vector<32x128xf32>, vector<8x128xf32> -> vector<8x128xf32>
    %56 = arith.addf %54, %55 : vector<8x128xf32>
    %57 = arith.negf %56 : vector<8x128xf32>
    %58 = math.exp %57 : vector<8x128xf32>
    %cst_31 = arith.constant 1.000000e+00 : f32
    %59 = vector.broadcast %cst_31 : f32 to vector<8x128xf32>
    %60 = arith.addf %59, %58 : vector<8x128xf32>
    %61 = arith.divf %59, %60 : vector<8x128xf32>
    %62 = math.tanh %56 : vector<8x128xf32>
    %63 = vector.extract_strided_slice %61 {offsets = [0, 0], sizes = [8, 32], strides = [1, 1]} : vector<8x128xf32> to vector<8x32xf32>
    %64 = vector.extract_strided_slice %61 {offsets = [0, 32], sizes = [8, 32], strides = [1, 1]} : vector<8x128xf32> to vector<8x32xf32>
    %65 = vector.extract_strided_slice %62 {offsets = [0, 64], sizes = [8, 32], strides = [1, 1]} : vector<8x128xf32> to vector<8x32xf32>
    %66 = vector.extract_strided_slice %61 {offsets = [0, 96], sizes = [8, 32], strides = [1, 1]} : vector<8x128xf32> to vector<8x32xf32>
    %67 = arith.mulf %64, %30 : vector<8x32xf32>
    %68 = arith.mulf %63, %65 : vector<8x32xf32>
    %69 = arith.addf %67, %68 : vector<8x32xf32>
    %70 = math.tanh %69 : vector<8x32xf32>
    %71 = arith.mulf %66, %70 : vector<8x32xf32>
    %cst_32 = arith.constant dense<0.000000e+00> : vector<8x128xf32>
    %72 = tpu.matmul %71, %1, %cst_32 {dimension_numbers = #tpu.dot_dimension_numbers<[1], [0], [0], [1], [0, 0, 1, 1], [], []>} : vector<8x32xf32>, vector<32x128xf32>, vector<8x128xf32> -> vector<8x128xf32>
    %cst_33 = arith.constant dense<0.000000e+00> : vector<8x128xf32>
    %73 = tpu.matmul %51, %2, %cst_33 {dimension_numbers = #tpu.dot_dimension_numbers<[1], [0], [0], [1], [0, 0, 1, 1], [], []>} : vector<8x32xf32>, vector<32x128xf32>, vector<8x128xf32> -> vector<8x128xf32>
    %74 = arith.addf %72, %73 : vector<8x128xf32>
    %75 = arith.addf %74, %5 : vector<8x128xf32>
    %76 = arith.negf %75 : vector<8x128xf32>
    %77 = math.exp %76 : vector<8x128xf32>
    %cst_34 = arith.constant 1.000000e+00 : f32
    %78 = vector.broadcast %cst_34 : f32 to vector<8x128xf32>
    %79 = arith.addf %78, %77 : vector<8x128xf32>
    %80 = arith.divf %78, %79 : vector<8x128xf32>
    %81 = math.tanh %75 : vector<8x128xf32>
    %82 = vector.extract_strided_slice %80 {offsets = [0, 0], sizes = [8, 32], strides = [1, 1]} : vector<8x128xf32> to vector<8x32xf32>
    %83 = vector.extract_strided_slice %80 {offsets = [0, 32], sizes = [8, 32], strides = [1, 1]} : vector<8x128xf32> to vector<8x32xf32>
    %84 = vector.extract_strided_slice %81 {offsets = [0, 64], sizes = [8, 32], strides = [1, 1]} : vector<8x128xf32> to vector<8x32xf32>
    %85 = vector.extract_strided_slice %80 {offsets = [0, 96], sizes = [8, 32], strides = [1, 1]} : vector<8x128xf32> to vector<8x32xf32>
    %86 = arith.mulf %83, %49 : vector<8x32xf32>
    %87 = arith.mulf %82, %84 : vector<8x32xf32>
    %88 = arith.addf %86, %87 : vector<8x32xf32>
    %89 = math.tanh %88 : vector<8x32xf32>
    %90 = arith.mulf %85, %89 : vector<8x32xf32>
    %c8 = arith.constant 8 : index
    %c0_35 = arith.constant 0 : index
    %91 = vector.load %arg12[%c8, %c0_35] : memref<64x32xf32, #tpu.memory_space<vmem>>, vector<8x32xf32>
    tpu.vector_store %arg12[%c8, %c0_35], %90 {strides = array<i32>} : memref<64x32xf32, #tpu.memory_space<vmem>>, vector<8x32xf32>,
    %c2 = arith.constant 2 : index
    %c0_36 = arith.constant 0 : index
    %c0_37 = arith.constant 0 : index
    %92 = vector.load %arg0[%c2, %c0_36, %c0_37] : memref<8x8x128xf32, #tpu.memory_space<vmem>>, vector<1x8x128xf32>
    %93 = vector.shape_cast %92 : vector<1x8x128xf32> to vector<8x128xf32>
    %cst_38 = arith.constant dense<0.000000e+00> : vector<8x128xf32>
    %94 = tpu.matmul %71, %0, %cst_38 {dimension_numbers = #tpu.dot_dimension_numbers<[1], [0], [0], [1], [0, 0, 1, 1], [], []>} : vector<8x32xf32>, vector<32x128xf32>, vector<8x128xf32> -> vector<8x128xf32>
    %95 = arith.addf %93, %94 : vector<8x128xf32>
    %96 = arith.negf %95 : vector<8x128xf32>
    %97 = math.exp %96 : vector<8x128xf32>
    %cst_39 = arith.constant 1.000000e+00 : f32
    %98 = vector.broadcast %cst_39 : f32 to vector<8x128xf32>
    %99 = arith.addf %98, %97 : vector<8x128xf32>
    %100 = arith.divf %98, %99 : vector<8x128xf32>
    %101 = math.tanh %95 : vector<8x128xf32>
    %102 = vector.extract_strided_slice %100 {offsets = [0, 0], sizes = [8, 32], strides = [1, 1]} : vector<8x128xf32> to vector<8x32xf32>
    %103 = vector.extract_strided_slice %100 {offsets = [0, 32], sizes = [8, 32], strides = [1, 1]} : vector<8x128xf32> to vector<8x32xf32>
    %104 = vector.extract_strided_slice %101 {offsets = [0, 64], sizes = [8, 32], strides = [1, 1]} : vector<8x128xf32> to vector<8x32xf32>
    %105 = vector.extract_strided_slice %100 {offsets = [0, 96], sizes = [8, 32], strides = [1, 1]} : vector<8x128xf32> to vector<8x32xf32>
    %106 = arith.mulf %103, %69 : vector<8x32xf32>
    %107 = arith.mulf %102, %104 : vector<8x32xf32>
    %108 = arith.addf %106, %107 : vector<8x32xf32>
    %109 = math.tanh %108 : vector<8x32xf32>
    %110 = arith.mulf %105, %109 : vector<8x32xf32>
    %cst_40 = arith.constant dense<0.000000e+00> : vector<8x128xf32>
    %111 = tpu.matmul %110, %1, %cst_40 {dimension_numbers = #tpu.dot_dimension_numbers<[1], [0], [0], [1], [0, 0, 1, 1], [], []>} : vector<8x32xf32>, vector<32x128xf32>, vector<8x128xf32> -> vector<8x128xf32>
    %cst_41 = arith.constant dense<0.000000e+00> : vector<8x128xf32>
    %112 = tpu.matmul %90, %2, %cst_41 {dimension_numbers = #tpu.dot_dimension_numbers<[1], [0], [0], [1], [0, 0, 1, 1], [], []>} : vector<8x32xf32>, vector<32x128xf32>, vector<8x128xf32> -> vector<8x128xf32>
    %113 = arith.addf %111, %112 : vector<8x128xf32>
    %114 = arith.addf %113, %5 : vector<8x128xf32>
    %115 = arith.negf %114 : vector<8x128xf32>
    %116 = math.exp %115 : vector<8x128xf32>
    %cst_42 = arith.constant 1.000000e+00 : f32
    %117 = vector.broadcast %cst_42 : f32 to vector<8x128xf32>
    %118 = arith.addf %117, %116 : vector<8x128xf32>
    %119 = arith.divf %117, %118 : vector<8x128xf32>
    %120 = math.tanh %114 : vector<8x128xf32>
    %121 = vector.extract_strided_slice %119 {offsets = [0, 0], sizes = [8, 32], strides = [1, 1]} : vector<8x128xf32> to vector<8x32xf32>
    %122 = vector.extract_strided_slice %119 {offsets = [0, 32], sizes = [8, 32], strides = [1, 1]} : vector<8x128xf32> to vector<8x32xf32>
    %123 = vector.extract_strided_slice %120 {offsets = [0, 64], sizes = [8, 32], strides = [1, 1]} : vector<8x128xf32> to vector<8x32xf32>
    %124 = vector.extract_strided_slice %119 {offsets = [0, 96], sizes = [8, 32], strides = [1, 1]} : vector<8x128xf32> to vector<8x32xf32>
    %125 = arith.mulf %122, %88 : vector<8x32xf32>
    %126 = arith.mulf %121, %123 : vector<8x32xf32>
    %127 = arith.addf %125, %126 : vector<8x32xf32>
    %128 = math.tanh %127 : vector<8x32xf32>
    %129 = arith.mulf %124, %128 : vector<8x32xf32>
    %c16 = arith.constant 16 : index
    %c0_43 = arith.constant 0 : index
    %130 = vector.load %arg12[%c16, %c0_43] : memref<64x32xf32, #tpu.memory_space<vmem>>, vector<8x32xf32>
    tpu.vector_store %arg12[%c16, %c0_43], %129 {strides = array<i32>} : memref<64x32xf32, #tpu.memory_space<vmem>>, vector<8x32xf32>,
    %c3 = arith.constant 3 : index
    %c0_44 = arith.constant 0 : index
    %c0_45 = arith.constant 0 : index
    %131 = vector.load %arg0[%c3, %c0_44, %c0_45] : memref<8x8x128xf32, #tpu.memory_space<vmem>>, vector<1x8x128xf32>
    %132 = vector.shape_cast %131 : vector<1x8x128xf32> to vector<8x128xf32>
    %cst_46 = arith.constant dense<0.000000e+00> : vector<8x128xf32>
    %133 = tpu.matmul %110, %0, %cst_46 {dimension_numbers = #tpu.dot_dimension_numbers<[1], [0], [0], [1], [0, 0, 1, 1], [], []>} : vector<8x32xf32>, vector<32x128xf32>, vector<8x128xf32> -> vector<8x128xf32>
    %134 = arith.addf %132, %133 : vector<8x128xf32>
    %135 = arith.negf %134 : vector<8x128xf32>
    %136 = math.exp %135 : vector<8x128xf32>
    %cst_47 = arith.constant 1.000000e+00 : f32
    %137 = vector.broadcast %cst_47 : f32 to vector<8x128xf32>
    %138 = arith.addf %137, %136 : vector<8x128xf32>
    %139 = arith.divf %137, %138 : vector<8x128xf32>
    %140 = math.tanh %134 : vector<8x128xf32>
    %141 = vector.extract_strided_slice %139 {offsets = [0, 0], sizes = [8, 32], strides = [1, 1]} : vector<8x128xf32> to vector<8x32xf32>
    %142 = vector.extract_strided_slice %139 {offsets = [0, 32], sizes = [8, 32], strides = [1, 1]} : vector<8x128xf32> to vector<8x32xf32>
    %143 = vector.extract_strided_slice %140 {offsets = [0, 64], sizes = [8, 32], strides = [1, 1]} : vector<8x128xf32> to vector<8x32xf32>
    %144 = vector.extract_strided_slice %139 {offsets = [0, 96], sizes = [8, 32], strides = [1, 1]} : vector<8x128xf32> to vector<8x32xf32>
    %145 = arith.mulf %142, %108 : vector<8x32xf32>
    %146 = arith.mulf %141, %143 : vector<8x32xf32>
    %147 = arith.addf %145, %146 : vector<8x32xf32>
    %148 = math.tanh %147 : vector<8x32xf32>
    %149 = arith.mulf %144, %148 : vector<8x32xf32>
    %cst_48 = arith.constant dense<0.000000e+00> : vector<8x128xf32>
    %150 = tpu.matmul %149, %1, %cst_48 {dimension_numbers = #tpu.dot_dimension_numbers<[1], [0], [0], [1], [0, 0, 1, 1], [], []>} : vector<8x32xf32>, vector<32x128xf32>, vector<8x128xf32> -> vector<8x128xf32>
    %cst_49 = arith.constant dense<0.000000e+00> : vector<8x128xf32>
    %151 = tpu.matmul %129, %2, %cst_49 {dimension_numbers = #tpu.dot_dimension_numbers<[1], [0], [0], [1], [0, 0, 1, 1], [], []>} : vector<8x32xf32>, vector<32x128xf32>, vector<8x128xf32> -> vector<8x128xf32>
    %152 = arith.addf %150, %151 : vector<8x128xf32>
    %153 = arith.addf %152, %5 : vector<8x128xf32>
    %154 = arith.negf %153 : vector<8x128xf32>
    %155 = math.exp %154 : vector<8x128xf32>
    %cst_50 = arith.constant 1.000000e+00 : f32
    %156 = vector.broadcast %cst_50 : f32 to vector<8x128xf32>
    %157 = arith.addf %156, %155 : vector<8x128xf32>
    %158 = arith.divf %156, %157 : vector<8x128xf32>
    %159 = math.tanh %153 : vector<8x128xf32>
    %160 = vector.extract_strided_slice %158 {offsets = [0, 0], sizes = [8, 32], strides = [1, 1]} : vector<8x128xf32> to vector<8x32xf32>
    %161 = vector.extract_strided_slice %158 {offsets = [0, 32], sizes = [8, 32], strides = [1, 1]} : vector<8x128xf32> to vector<8x32xf32>
    %162 = vector.extract_strided_slice %159 {offsets = [0, 64], sizes = [8, 32], strides = [1, 1]} : vector<8x128xf32> to vector<8x32xf32>
    %163 = vector.extract_strided_slice %158 {offsets = [0, 96], sizes = [8, 32], strides = [1, 1]} : vector<8x128xf32> to vector<8x32xf32>
    %164 = arith.mulf %161, %127 : vector<8x32xf32>
    %165 = arith.mulf %160, %162 : vector<8x32xf32>
    %166 = arith.addf %164, %165 : vector<8x32xf32>
    %167 = math.tanh %166 : vector<8x32xf32>
    %168 = arith.mulf %163, %167 : vector<8x32xf32>
    %c24 = arith.constant 24 : index
    %c0_51 = arith.constant 0 : index
    %169 = vector.load %arg12[%c24, %c0_51] : memref<64x32xf32, #tpu.memory_space<vmem>>, vector<8x32xf32>
    tpu.vector_store %arg12[%c24, %c0_51], %168 {strides = array<i32>} : memref<64x32xf32, #tpu.memory_space<vmem>>, vector<8x32xf32>,
    %c4 = arith.constant 4 : index
    %c0_52 = arith.constant 0 : index
    %c0_53 = arith.constant 0 : index
    %170 = vector.load %arg0[%c4, %c0_52, %c0_53] : memref<8x8x128xf32, #tpu.memory_space<vmem>>, vector<1x8x128xf32>
    %171 = vector.shape_cast %170 : vector<1x8x128xf32> to vector<8x128xf32>
    %cst_54 = arith.constant dense<0.000000e+00> : vector<8x128xf32>
    %172 = tpu.matmul %149, %0, %cst_54 {dimension_numbers = #tpu.dot_dimension_numbers<[1], [0], [0], [1], [0, 0, 1, 1], [], []>} : vector<8x32xf32>, vector<32x128xf32>, vector<8x128xf32> -> vector<8x128xf32>
    %173 = arith.addf %171, %172 : vector<8x128xf32>
    %174 = arith.negf %173 : vector<8x128xf32>
    %175 = math.exp %174 : vector<8x128xf32>
    %cst_55 = arith.constant 1.000000e+00 : f32
    %176 = vector.broadcast %cst_55 : f32 to vector<8x128xf32>
    %177 = arith.addf %176, %175 : vector<8x128xf32>
    %178 = arith.divf %176, %177 : vector<8x128xf32>
    %179 = math.tanh %173 : vector<8x128xf32>
    %180 = vector.extract_strided_slice %178 {offsets = [0, 0], sizes = [8, 32], strides = [1, 1]} : vector<8x128xf32> to vector<8x32xf32>
    %181 = vector.extract_strided_slice %178 {offsets = [0, 32], sizes = [8, 32], strides = [1, 1]} : vector<8x128xf32> to vector<8x32xf32>
    %182 = vector.extract_strided_slice %179 {offsets = [0, 64], sizes = [8, 32], strides = [1, 1]} : vector<8x128xf32> to vector<8x32xf32>
    %183 = vector.extract_strided_slice %178 {offsets = [0, 96], sizes = [8, 32], strides = [1, 1]} : vector<8x128xf32> to vector<8x32xf32>
    %184 = arith.mulf %181, %147 : vector<8x32xf32>
    %185 = arith.mulf %180, %182 : vector<8x32xf32>
    %186 = arith.addf %184, %185 : vector<8x32xf32>
    %187 = math.tanh %186 : vector<8x32xf32>
    %188 = arith.mulf %183, %187 : vector<8x32xf32>
    %cst_56 = arith.constant dense<0.000000e+00> : vector<8x128xf32>
    %189 = tpu.matmul %188, %1, %cst_56 {dimension_numbers = #tpu.dot_dimension_numbers<[1], [0], [0], [1], [0, 0, 1, 1], [], []>} : vector<8x32xf32>, vector<32x128xf32>, vector<8x128xf32> -> vector<8x128xf32>
    %cst_57 = arith.constant dense<0.000000e+00> : vector<8x128xf32>
    %190 = tpu.matmul %168, %2, %cst_57 {dimension_numbers = #tpu.dot_dimension_numbers<[1], [0], [0], [1], [0, 0, 1, 1], [], []>} : vector<8x32xf32>, vector<32x128xf32>, vector<8x128xf32> -> vector<8x128xf32>
    %191 = arith.addf %189, %190 : vector<8x128xf32>
    %192 = arith.addf %191, %5 : vector<8x128xf32>
    %193 = arith.negf %192 : vector<8x128xf32>
    %194 = math.exp %193 : vector<8x128xf32>
    %cst_58 = arith.constant 1.000000e+00 : f32
    %195 = vector.broadcast %cst_58 : f32 to vector<8x128xf32>
    %196 = arith.addf %195, %194 : vector<8x128xf32>
    %197 = arith.divf %195, %196 : vector<8x128xf32>
    %198 = math.tanh %192 : vector<8x128xf32>
    %199 = vector.extract_strided_slice %197 {offsets = [0, 0], sizes = [8, 32], strides = [1, 1]} : vector<8x128xf32> to vector<8x32xf32>
    %200 = vector.extract_strided_slice %197 {offsets = [0, 32], sizes = [8, 32], strides = [1, 1]} : vector<8x128xf32> to vector<8x32xf32>
    %201 = vector.extract_strided_slice %198 {offsets = [0, 64], sizes = [8, 32], strides = [1, 1]} : vector<8x128xf32> to vector<8x32xf32>
    %202 = vector.extract_strided_slice %197 {offsets = [0, 96], sizes = [8, 32], strides = [1, 1]} : vector<8x128xf32> to vector<8x32xf32>
    %203 = arith.mulf %200, %166 : vector<8x32xf32>
    %204 = arith.mulf %199, %201 : vector<8x32xf32>
    %205 = arith.addf %203, %204 : vector<8x32xf32>
    %206 = math.tanh %205 : vector<8x32xf32>
    %207 = arith.mulf %202, %206 : vector<8x32xf32>
    %c32 = arith.constant 32 : index
    %c0_59 = arith.constant 0 : index
    %208 = vector.load %arg12[%c32, %c0_59] : memref<64x32xf32, #tpu.memory_space<vmem>>, vector<8x32xf32>
    tpu.vector_store %arg12[%c32, %c0_59], %207 {strides = array<i32>} : memref<64x32xf32, #tpu.memory_space<vmem>>, vector<8x32xf32>,
    %c5 = arith.constant 5 : index
    %c0_60 = arith.constant 0 : index
    %c0_61 = arith.constant 0 : index
    %209 = vector.load %arg0[%c5, %c0_60, %c0_61] : memref<8x8x128xf32, #tpu.memory_space<vmem>>, vector<1x8x128xf32>
    %210 = vector.shape_cast %209 : vector<1x8x128xf32> to vector<8x128xf32>
    %cst_62 = arith.constant dense<0.000000e+00> : vector<8x128xf32>
    %211 = tpu.matmul %188, %0, %cst_62 {dimension_numbers = #tpu.dot_dimension_numbers<[1], [0], [0], [1], [0, 0, 1, 1], [], []>} : vector<8x32xf32>, vector<32x128xf32>, vector<8x128xf32> -> vector<8x128xf32>
    %212 = arith.addf %210, %211 : vector<8x128xf32>
    %213 = arith.negf %212 : vector<8x128xf32>
    %214 = math.exp %213 : vector<8x128xf32>
    %cst_63 = arith.constant 1.000000e+00 : f32
    %215 = vector.broadcast %cst_63 : f32 to vector<8x128xf32>
    %216 = arith.addf %215, %214 : vector<8x128xf32>
    %217 = arith.divf %215, %216 : vector<8x128xf32>
    %218 = math.tanh %212 : vector<8x128xf32>
    %219 = vector.extract_strided_slice %217 {offsets = [0, 0], sizes = [8, 32], strides = [1, 1]} : vector<8x128xf32> to vector<8x32xf32>
    %220 = vector.extract_strided_slice %217 {offsets = [0, 32], sizes = [8, 32], strides = [1, 1]} : vector<8x128xf32> to vector<8x32xf32>
    %221 = vector.extract_strided_slice %218 {offsets = [0, 64], sizes = [8, 32], strides = [1, 1]} : vector<8x128xf32> to vector<8x32xf32>
    %222 = vector.extract_strided_slice %217 {offsets = [0, 96], sizes = [8, 32], strides = [1, 1]} : vector<8x128xf32> to vector<8x32xf32>
    %223 = arith.mulf %220, %186 : vector<8x32xf32>
    %224 = arith.mulf %219, %221 : vector<8x32xf32>
    %225 = arith.addf %223, %224 : vector<8x32xf32>
    %226 = math.tanh %225 : vector<8x32xf32>
    %227 = arith.mulf %222, %226 : vector<8x32xf32>
    %cst_64 = arith.constant dense<0.000000e+00> : vector<8x128xf32>
    %228 = tpu.matmul %227, %1, %cst_64 {dimension_numbers = #tpu.dot_dimension_numbers<[1], [0], [0], [1], [0, 0, 1, 1], [], []>} : vector<8x32xf32>, vector<32x128xf32>, vector<8x128xf32> -> vector<8x128xf32>
    %cst_65 = arith.constant dense<0.000000e+00> : vector<8x128xf32>
    %229 = tpu.matmul %207, %2, %cst_65 {dimension_numbers = #tpu.dot_dimension_numbers<[1], [0], [0], [1], [0, 0, 1, 1], [], []>} : vector<8x32xf32>, vector<32x128xf32>, vector<8x128xf32> -> vector<8x128xf32>
    %230 = arith.addf %228, %229 : vector<8x128xf32>
    %231 = arith.addf %230, %5 : vector<8x128xf32>
    %232 = arith.negf %231 : vector<8x128xf32>
    %233 = math.exp %232 : vector<8x128xf32>
    %cst_66 = arith.constant 1.000000e+00 : f32
    %234 = vector.broadcast %cst_66 : f32 to vector<8x128xf32>
    %235 = arith.addf %234, %233 : vector<8x128xf32>
    %236 = arith.divf %234, %235 : vector<8x128xf32>
    %237 = math.tanh %231 : vector<8x128xf32>
    %238 = vector.extract_strided_slice %236 {offsets = [0, 0], sizes = [8, 32], strides = [1, 1]} : vector<8x128xf32> to vector<8x32xf32>
    %239 = vector.extract_strided_slice %236 {offsets = [0, 32], sizes = [8, 32], strides = [1, 1]} : vector<8x128xf32> to vector<8x32xf32>
    %240 = vector.extract_strided_slice %237 {offsets = [0, 64], sizes = [8, 32], strides = [1, 1]} : vector<8x128xf32> to vector<8x32xf32>
    %241 = vector.extract_strided_slice %236 {offsets = [0, 96], sizes = [8, 32], strides = [1, 1]} : vector<8x128xf32> to vector<8x32xf32>
    %242 = arith.mulf %239, %205 : vector<8x32xf32>
    %243 = arith.mulf %238, %240 : vector<8x32xf32>
    %244 = arith.addf %242, %243 : vector<8x32xf32>
    %245 = math.tanh %244 : vector<8x32xf32>
    %246 = arith.mulf %241, %245 : vector<8x32xf32>
    %c40 = arith.constant 40 : index
    %c0_67 = arith.constant 0 : index
    %247 = vector.load %arg12[%c40, %c0_67] : memref<64x32xf32, #tpu.memory_space<vmem>>, vector<8x32xf32>
    tpu.vector_store %arg12[%c40, %c0_67], %246 {strides = array<i32>} : memref<64x32xf32, #tpu.memory_space<vmem>>, vector<8x32xf32>,
    %c6 = arith.constant 6 : index
    %c0_68 = arith.constant 0 : index
    %c0_69 = arith.constant 0 : index
    %248 = vector.load %arg0[%c6, %c0_68, %c0_69] : memref<8x8x128xf32, #tpu.memory_space<vmem>>, vector<1x8x128xf32>
    %249 = vector.shape_cast %248 : vector<1x8x128xf32> to vector<8x128xf32>
    %cst_70 = arith.constant dense<0.000000e+00> : vector<8x128xf32>
    %250 = tpu.matmul %227, %0, %cst_70 {dimension_numbers = #tpu.dot_dimension_numbers<[1], [0], [0], [1], [0, 0, 1, 1], [], []>} : vector<8x32xf32>, vector<32x128xf32>, vector<8x128xf32> -> vector<8x128xf32>
    %251 = arith.addf %249, %250 : vector<8x128xf32>
    %252 = arith.negf %251 : vector<8x128xf32>
    %253 = math.exp %252 : vector<8x128xf32>
    %cst_71 = arith.constant 1.000000e+00 : f32
    %254 = vector.broadcast %cst_71 : f32 to vector<8x128xf32>
    %255 = arith.addf %254, %253 : vector<8x128xf32>
    %256 = arith.divf %254, %255 : vector<8x128xf32>
    %257 = math.tanh %251 : vector<8x128xf32>
    %258 = vector.extract_strided_slice %256 {offsets = [0, 0], sizes = [8, 32], strides = [1, 1]} : vector<8x128xf32> to vector<8x32xf32>
    %259 = vector.extract_strided_slice %256 {offsets = [0, 32], sizes = [8, 32], strides = [1, 1]} : vector<8x128xf32> to vector<8x32xf32>
    %260 = vector.extract_strided_slice %257 {offsets = [0, 64], sizes = [8, 32], strides = [1, 1]} : vector<8x128xf32> to vector<8x32xf32>
    %261 = vector.extract_strided_slice %256 {offsets = [0, 96], sizes = [8, 32], strides = [1, 1]} : vector<8x128xf32> to vector<8x32xf32>
    %262 = arith.mulf %259, %225 : vector<8x32xf32>
    %263 = arith.mulf %258, %260 : vector<8x32xf32>
    %264 = arith.addf %262, %263 : vector<8x32xf32>
    %265 = math.tanh %264 : vector<8x32xf32>
    %266 = arith.mulf %261, %265 : vector<8x32xf32>
    %cst_72 = arith.constant dense<0.000000e+00> : vector<8x128xf32>
    %267 = tpu.matmul %266, %1, %cst_72 {dimension_numbers = #tpu.dot_dimension_numbers<[1], [0], [0], [1], [0, 0, 1, 1], [], []>} : vector<8x32xf32>, vector<32x128xf32>, vector<8x128xf32> -> vector<8x128xf32>
    %cst_73 = arith.constant dense<0.000000e+00> : vector<8x128xf32>
    %268 = tpu.matmul %246, %2, %cst_73 {dimension_numbers = #tpu.dot_dimension_numbers<[1], [0], [0], [1], [0, 0, 1, 1], [], []>} : vector<8x32xf32>, vector<32x128xf32>, vector<8x128xf32> -> vector<8x128xf32>
    %269 = arith.addf %267, %268 : vector<8x128xf32>
    %270 = arith.addf %269, %5 : vector<8x128xf32>
    %271 = arith.negf %270 : vector<8x128xf32>
    %272 = math.exp %271 : vector<8x128xf32>
    %cst_74 = arith.constant 1.000000e+00 : f32
    %273 = vector.broadcast %cst_74 : f32 to vector<8x128xf32>
    %274 = arith.addf %273, %272 : vector<8x128xf32>
    %275 = arith.divf %273, %274 : vector<8x128xf32>
    %276 = math.tanh %270 : vector<8x128xf32>
    %277 = vector.extract_strided_slice %275 {offsets = [0, 0], sizes = [8, 32], strides = [1, 1]} : vector<8x128xf32> to vector<8x32xf32>
    %278 = vector.extract_strided_slice %275 {offsets = [0, 32], sizes = [8, 32], strides = [1, 1]} : vector<8x128xf32> to vector<8x32xf32>
    %279 = vector.extract_strided_slice %276 {offsets = [0, 64], sizes = [8, 32], strides = [1, 1]} : vector<8x128xf32> to vector<8x32xf32>
    %280 = vector.extract_strided_slice %275 {offsets = [0, 96], sizes = [8, 32], strides = [1, 1]} : vector<8x128xf32> to vector<8x32xf32>
    %281 = arith.mulf %278, %244 : vector<8x32xf32>
    %282 = arith.mulf %277, %279 : vector<8x32xf32>
    %283 = arith.addf %281, %282 : vector<8x32xf32>
    %284 = math.tanh %283 : vector<8x32xf32>
    %285 = arith.mulf %280, %284 : vector<8x32xf32>
    %c48 = arith.constant 48 : index
    %c0_75 = arith.constant 0 : index
    %286 = vector.load %arg12[%c48, %c0_75] : memref<64x32xf32, #tpu.memory_space<vmem>>, vector<8x32xf32>
    tpu.vector_store %arg12[%c48, %c0_75], %285 {strides = array<i32>} : memref<64x32xf32, #tpu.memory_space<vmem>>, vector<8x32xf32>,
    %c7 = arith.constant 7 : index
    %c0_76 = arith.constant 0 : index
    %c0_77 = arith.constant 0 : index
    %287 = vector.load %arg0[%c7, %c0_76, %c0_77] : memref<8x8x128xf32, #tpu.memory_space<vmem>>, vector<1x8x128xf32>
    %288 = vector.shape_cast %287 : vector<1x8x128xf32> to vector<8x128xf32>
    %cst_78 = arith.constant dense<0.000000e+00> : vector<8x128xf32>
    %289 = tpu.matmul %266, %0, %cst_78 {dimension_numbers = #tpu.dot_dimension_numbers<[1], [0], [0], [1], [0, 0, 1, 1], [], []>} : vector<8x32xf32>, vector<32x128xf32>, vector<8x128xf32> -> vector<8x128xf32>
    %290 = arith.addf %288, %289 : vector<8x128xf32>
    %291 = arith.negf %290 : vector<8x128xf32>
    %292 = math.exp %291 : vector<8x128xf32>
    %cst_79 = arith.constant 1.000000e+00 : f32
    %293 = vector.broadcast %cst_79 : f32 to vector<8x128xf32>
    %294 = arith.addf %293, %292 : vector<8x128xf32>
    %295 = arith.divf %293, %294 : vector<8x128xf32>
    %296 = math.tanh %290 : vector<8x128xf32>
    %297 = vector.extract_strided_slice %295 {offsets = [0, 0], sizes = [8, 32], strides = [1, 1]} : vector<8x128xf32> to vector<8x32xf32>
    %298 = vector.extract_strided_slice %295 {offsets = [0, 32], sizes = [8, 32], strides = [1, 1]} : vector<8x128xf32> to vector<8x32xf32>
    %299 = vector.extract_strided_slice %296 {offsets = [0, 64], sizes = [8, 32], strides = [1, 1]} : vector<8x128xf32> to vector<8x32xf32>
    %300 = vector.extract_strided_slice %295 {offsets = [0, 96], sizes = [8, 32], strides = [1, 1]} : vector<8x128xf32> to vector<8x32xf32>
    %301 = arith.mulf %298, %264 : vector<8x32xf32>
    %302 = arith.mulf %297, %299 : vector<8x32xf32>
    %303 = arith.addf %301, %302 : vector<8x32xf32>
    %304 = math.tanh %303 : vector<8x32xf32>
    %305 = arith.mulf %300, %304 : vector<8x32xf32>
    %cst_80 = arith.constant dense<0.000000e+00> : vector<8x128xf32>
    %306 = tpu.matmul %305, %1, %cst_80 {dimension_numbers = #tpu.dot_dimension_numbers<[1], [0], [0], [1], [0, 0, 1, 1], [], []>} : vector<8x32xf32>, vector<32x128xf32>, vector<8x128xf32> -> vector<8x128xf32>
    %cst_81 = arith.constant dense<0.000000e+00> : vector<8x128xf32>
    %307 = tpu.matmul %285, %2, %cst_81 {dimension_numbers = #tpu.dot_dimension_numbers<[1], [0], [0], [1], [0, 0, 1, 1], [], []>} : vector<8x32xf32>, vector<32x128xf32>, vector<8x128xf32> -> vector<8x128xf32>
    %308 = arith.addf %306, %307 : vector<8x128xf32>
    %309 = arith.addf %308, %5 : vector<8x128xf32>
    %310 = arith.negf %309 : vector<8x128xf32>
    %311 = math.exp %310 : vector<8x128xf32>
    %cst_82 = arith.constant 1.000000e+00 : f32
    %312 = vector.broadcast %cst_82 : f32 to vector<8x128xf32>
    %313 = arith.addf %312, %311 : vector<8x128xf32>
    %314 = arith.divf %312, %313 : vector<8x128xf32>
    %315 = math.tanh %309 : vector<8x128xf32>
    %316 = vector.extract_strided_slice %314 {offsets = [0, 0], sizes = [8, 32], strides = [1, 1]} : vector<8x128xf32> to vector<8x32xf32>
    %317 = vector.extract_strided_slice %314 {offsets = [0, 32], sizes = [8, 32], strides = [1, 1]} : vector<8x128xf32> to vector<8x32xf32>
    %318 = vector.extract_strided_slice %315 {offsets = [0, 64], sizes = [8, 32], strides = [1, 1]} : vector<8x128xf32> to vector<8x32xf32>
    %319 = vector.extract_strided_slice %314 {offsets = [0, 96], sizes = [8, 32], strides = [1, 1]} : vector<8x128xf32> to vector<8x32xf32>
    %320 = arith.mulf %317, %283 : vector<8x32xf32>
    %321 = arith.mulf %316, %318 : vector<8x32xf32>
    %322 = arith.addf %320, %321 : vector<8x32xf32>
    %323 = math.tanh %322 : vector<8x32xf32>
    %324 = arith.mulf %319, %323 : vector<8x32xf32>
    %c56 = arith.constant 56 : index
    %c0_83 = arith.constant 0 : index
    %325 = vector.load %arg12[%c56, %c0_83] : memref<64x32xf32, #tpu.memory_space<vmem>>, vector<8x32xf32>
    tpu.vector_store %arg12[%c56, %c0_83], %324 {strides = array<i32>} : memref<64x32xf32, #tpu.memory_space<vmem>>, vector<8x32xf32>,
    %c0_84 = arith.constant 0 : index
    %c0_85 = arith.constant 0 : index
    %c0_86 = arith.constant 0 : index
    %326 = vector.load %arg10[%c0_84, %c0_85, %c0_86] : memref<2x8x32xf32, #tpu.memory_space<vmem>>, vector<1x8x32xf32>
    %327 = vector.shape_cast %326 : vector<1x8x32xf32> to vector<8x32xf32>
    %328 = vector.shape_cast %305 : vector<8x32xf32> to vector<1x8x32xf32>
    tpu.vector_store %arg10[%c0_84, %c0_85, %c0_86], %328 {strides = array<i32>} : memref<2x8x32xf32, #tpu.memory_space<vmem>>, vector<1x8x32xf32>,
    %c1_87 = arith.constant 1 : index
    %c0_88 = arith.constant 0 : index
    %c0_89 = arith.constant 0 : index
    %329 = vector.load %arg10[%c1_87, %c0_88, %c0_89] : memref<2x8x32xf32, #tpu.memory_space<vmem>>, vector<1x8x32xf32>
    %330 = vector.shape_cast %329 : vector<1x8x32xf32> to vector<8x32xf32>
    %331 = vector.shape_cast %324 : vector<8x32xf32> to vector<1x8x32xf32>
    tpu.vector_store %arg10[%c1_87, %c0_88, %c0_89], %331 {strides = array<i32>} : memref<2x8x32xf32, #tpu.memory_space<vmem>>, vector<1x8x32xf32>,
    %c0_90 = arith.constant 0 : index
    %c0_91 = arith.constant 0 : index
    %c0_92 = arith.constant 0 : index
    %332 = vector.load %arg11[%c0_90, %c0_91, %c0_92] : memref<2x8x32xf32, #tpu.memory_space<vmem>>, vector<1x8x32xf32>
    %333 = vector.shape_cast %332 : vector<1x8x32xf32> to vector<8x32xf32>
    %334 = vector.shape_cast %303 : vector<8x32xf32> to vector<1x8x32xf32>
    tpu.vector_store %arg11[%c0_90, %c0_91, %c0_92], %334 {strides = array<i32>} : memref<2x8x32xf32, #tpu.memory_space<vmem>>, vector<1x8x32xf32>,
    %c1_93 = arith.constant 1 : index
    %c0_94 = arith.constant 0 : index
    %c0_95 = arith.constant 0 : index
    %335 = vector.load %arg11[%c1_93, %c0_94, %c0_95] : memref<2x8x32xf32, #tpu.memory_space<vmem>>, vector<1x8x32xf32>
    %336 = vector.shape_cast %335 : vector<1x8x32xf32> to vector<8x32xf32>
    %337 = vector.shape_cast %322 : vector<8x32xf32> to vector<1x8x32xf32>
    tpu.vector_store %arg11[%c1_93, %c0_94, %c0_95], %337 {strides = array<i32>} : memref<2x8x32xf32, #tpu.memory_space<vmem>>, vector<1x8x32xf32>,
    %c0_96 = arith.constant 0 : index
    %c0_97 = arith.constant 0 : index
    %338 = vector.load %arg12[%c0_96, %c0_97] : memref<64x32xf32, #tpu.memory_space<vmem>>, vector<64x32xf32>
    %c0_98 = arith.constant 0 : index
    %c0_99 = arith.constant 0 : index
    %339 = vector.load %arg7[%c0_98, %c0_99] : memref<32x128xf32, #tpu.memory_space<vmem>>, vector<32x128xf32>
    %cst_100 = arith.constant dense<0.000000e+00> : vector<64x128xf32>
    %340 = tpu.matmul %338, %339, %cst_100 {dimension_numbers = #tpu.dot_dimension_numbers<[1], [0], [0], [1], [0, 0, 1, 1], [], []>} : vector<64x32xf32>, vector<32x128xf32>, vector<64x128xf32> -> vector<64x128xf32>
    %c0_101 = arith.constant 0 : index
    %c0_102 = arith.constant 0 : index
    %341 = vector.load %arg8[%c0_101, %c0_102] : memref<1x128xf32, #tpu.memory_space<vmem>>, vector<1x128xf32>
    %342 = vector.broadcast %341 : vector<1x128xf32> to vector<64x128xf32>
    %343 = arith.addf %340, %342 : vector<64x128xf32>
    %c0_103 = arith.constant 0 : index
    %c0_104 = arith.constant 0 : index
    %344 = vector.load %arg9[%c0_103, %c0_104] : memref<64x128xf32, #tpu.memory_space<vmem>>, vector<64x128xf32>
    tpu.vector_store %arg9[%c0_103, %c0_104], %343 {strides = array<i32>} : memref<64x128xf32, #tpu.memory_space<vmem>>, vector<64x128xf32>,
    return
  }
}

</mosaic_0001>

<llo_original>
// kernel: decoder_decode.1
$region0: #{decoder_decode.1}
  #allocation0 [shape = 'u32[]', space=smem, size = 0x4, offset = 0x4, fixed_abs, tag = 'smem constant byte address 0x4 - core index']
  #allocation1 [shape = 'u32[144,128]{1,0:T(1,128)}', space=vmem, size = 0x12000, scoped, tag = 'internal scratch']
  #allocation2 [shape = 'f32[64,32]{1,0:T(8,128)}', space=vmem, size = 0x8000, scoped, tag = 'scratch operand']
  %s0 = inlined_call_operand.vmem [shape: f32[8,8,128], index: 0, kind: input, shape index: {}]
  %s1 = inlined_call_operand.vmem [shape: f32[2,8,32], index: 1, kind: input, shape index: {}]
  %s2 = inlined_call_operand.vmem [shape: f32[2,8,32], index: 2, kind: input, shape index: {}]
  %s3 = inlined_call_operand.vmem [shape: f32[32,128], index: 3, kind: input, shape index: {}]
  %s4 = inlined_call_operand.vmem [shape: f32[32,128], index: 4, kind: input, shape index: {}]
  %s5 = inlined_call_operand.vmem [shape: f32[32,128], index: 5, kind: input, shape index: {}]
  %s6 = inlined_call_operand.vmem [shape: f32[1,128], index: 6, kind: input, shape index: {}]
  %s7 = inlined_call_operand.vmem [shape: f32[32,128], index: 7, kind: input, shape index: {}]
  %s8 = inlined_call_operand.vmem [shape: f32[1,128], index: 8, kind: input, shape index: {}]
  %s9 = inlined_call_operand.hbm [shape: f32[64,128], index: 9, kind: output, shape index: {0}]
  %s10 = inlined_call_operand.hbm [shape: f32[2,8,32], index: 10, kind: output, shape index: {1}]
  %s11 = inlined_call_operand.hbm [shape: f32[2,8,32], index: 11, kind: output, shape index: {2}]
  %12 = xla_tuple %s9, %s10, %s11
  %s13 = sld [smem:[#allocation0]]
  $region62: #{decoder_decode.1} parent=0
    _
  %s15 = ssub.s32 1, %s13
  %s16 = scalar_select 0, %s15, %s13
  $region1: #{decoder_decode.1} parent=0
    #allocation3 [shape = 'u8[32768]{0}', space=vmem, size = 0x8000, scoped, tag = 'output window, operand 0, single buffered']
    #allocation4 [shape = 's32[1]{0}', space=sflag, size = 0x4, scoped, tag = 'scoped memory for decoder_decode.1']
    #allocation5 [shape = 'u8[8192]{0}', space=vmem, size = 0x2000, scoped, tag = 'output window, operand 1, single buffered']
    #allocation6 [shape = 's32[1]{0}', space=sflag, size = 0x4, scoped, tag = 'scoped memory for decoder_decode.1']
    #allocation7 [shape = 'u8[8192]{0}', space=vmem, size = 0x2000, scoped, tag = 'output window, operand 2, single buffered']
    %17 = vsyncpa [#allocation4], 0
    %18 = vsyncpa [#allocation6], 0
    // Predicated region
    $region2: #{decoder_decode.1} parent=1 // pred_check
      _
    $region3: #{decoder_decode.1} parent=1 // pred_check_branch
      %20 = sbr.rel (0) target = $region5
    $region4: #{decoder_decode.1} parent=1 // pred_region
      _
    $region5: #{decoder_decode.1} parent=1 // pred_fallthru
      _
    // Predicated region
    $region6: #{decoder_decode.1} parent=1 // pred_check
      _
    $region7: #{decoder_decode.1} parent=1 // pred_check_branch
      %22 = sbr.rel (0) target = $region9
    $region8: #{decoder_decode.1} parent=1 // pred_region
      _
    $region9: #{decoder_decode.1} parent=1 // pred_fallthru
      _
    // Predicated region
    $region10: #{decoder_decode.1} parent=1 // pred_check
      _
    $region11: #{decoder_decode.1} parent=1 // pred_check_branch
      %24 = sbr.rel (0) target = $region13
    $region12: #{decoder_decode.1} parent=1 // pred_region
      _
    $region13: #{decoder_decode.1} parent=1 // pred_fallthru
      _
    // Predicated region
    $region14: #{decoder_decode.1} parent=1 // pred_check
      _
    $region15: #{decoder_decode.1} parent=1 // pred_check_branch
      %26 = sbr.rel (0) target = $region17
    $region16: #{decoder_decode.1} parent=1 // pred_region
      _
    $region17: #{decoder_decode.1} parent=1 // pred_fallthru
      _
    // Predicated region
    $region18: #{decoder_decode.1} parent=1 // pred_check
      _
    $region19: #{decoder_decode.1} parent=1 // pred_check_branch
      %28 = sbr.rel (0) target = $region21
    $region20: #{decoder_decode.1} parent=1 // pred_region
      _
    $region21: #{decoder_decode.1} parent=1 // pred_fallthru
      _
    // Predicated region
    $region22: #{decoder_decode.1} parent=1 // pred_check
      _
    $region23: #{decoder_decode.1} parent=1 // pred_check_branch
      %30 = sbr.rel (0) target = $region25
    $region24: #{decoder_decode.1} parent=1 // pred_region
      _
    $region25: #{decoder_decode.1} parent=1 // pred_fallthru
      _
    // Predicated region
    $region26: #{decoder_decode.1} parent=1 // pred_check
      _
    $region27: #{decoder_decode.1} parent=1 // pred_check_branch
      %32 = sbr.rel (0) target = $region29
    $region28: #{decoder_decode.1} parent=1 // pred_region
      _
    $region29: #{decoder_decode.1} parent=1 // pred_fallthru
      _
    // Predicated region
    $region30: #{decoder_decode.1} parent=1 // pred_check
      _
    $region31: #{decoder_decode.1} parent=1 // pred_check_branch
      %34 = sbr.rel (0) target = $region33
    $region32: #{decoder_decode.1} parent=1 // pred_region
      _
    $region33: #{decoder_decode.1} parent=1 // pred_fallthru
      _
    // Predicated region
    $region34: #{decoder_decode.1} parent=1 // pred_check
      _
    $region35: #{decoder_decode.1} parent=1 // pred_check_branch
      %36 = sbr.rel (0) target = $region37
    $region36: #{decoder_decode.1} parent=1 // pred_region
      _
    $region37: #{decoder_decode.1} parent=1 // pred_fallthru
      _
    %v37 = vld [vmem:[%s3] sm:$0xff]
    %v38 = vld [vmem:[%s3 + $0x8] sm:$0xff]
    %v39 = vld [vmem:[%s3 + $0x10] sm:$0xff]
    %v40 = vld [vmem:[%s3 + $0x18] sm:$0xff]
    %v41 = vld [vmem:[%s4] sm:$0xff]
    %v42 = vld [vmem:[%s4 + $0x8] sm:$0xff]
    %v43 = vld [vmem:[%s4 + $0x10] sm:$0xff]
    %v44 = vld [vmem:[%s4 + $0x18] sm:$0xff]
    %v45 = vld [vmem:[%s5] sm:$0xff]
    %v46 = vld [vmem:[%s5 + $0x8] sm:$0xff]
    %v47 = vld [vmem:[%s5 + $0x10] sm:$0xff]
    %v48 = vld [vmem:[%s5 + $0x18] sm:$0xff]
    %v49 = vld [vmem:[%s6] sm:$0x1]
    %v51 = vlaneseq
    %v52 = vshrl.u32 %v51, 7
    %v53 = vsub.s32 0, %v52
    %v54 = vrot.slane %v49, %v53
    %v56 = vld [vmem:[%s1] sm:$0xff]
    %v57 = vld [vmem:[%s2] sm:$0xff]
    %s58 = scalar_lea.vmem %s1, 8
    %v59 = vld [vmem:[%s58] sm:$0xff]
    %s60 = scalar_lea.vmem %s2, 8
    %v61 = vld [vmem:[%s60] sm:$0xff]
    %v62 = vld [vmem:[%s0] sm:$0xff]
    %vm63 = vcmask 261120
    %v65 = vsel %vm63, %v56, 0
    %67 = vmatprep.subr.mxu0 0.0
    %68 = vmatpush1.msra.mxu0 0.0
    %69 = vmatprep.subr.mxu0 0.0
    %70 = vmatpush1.msra.mxu0 0.0
    %71 = vmatprep.subr.mxu0 0.0
    %72 = vmatpush1.msra.mxu0 0.0
    %73 = vmatprep.subr.mxu0 0.0
    %74 = vmatpush1.msra.mxu0 0.0
    %75 = vmatprep.subr.mxu0 0.0
    %76 = vmatpush1.msra.mxu0 0.0
    %77 = vmatprep.subr.mxu0 0.0
    %78 = vmatpush1.msra.mxu0 0.0
    %79 = vmatprep.subr.mxu0 0.0
    %80 = vmatpush1.msra.mxu0 0.0
    %81 = vmatprep.subr.mxu0 0.0
    %82 = vmatpush1.msra.mxu0 0.0
    %83 = vmatprep.subr.mxu0 0.0
    %84 = vmatpush1.msra.mxu0 0.0
    %85 = vmatprep.subr.mxu0 0.0
    %86 = vmatpush1.msra.mxu0 0.0
    %87 = vmatprep.subr.mxu0 0.0
    %88 = vmatpush1.msra.mxu0 0.0
    %89 = vmatprep.subr.mxu0 0.0
    %90 = vmatpush1.msra.mxu0 0.0
    %91 = vmatprep.subr.mxu0 0.0
    %92 = vmatpush1.msra.mxu0 %v40
    %93 = vmatprep.subr.mxu0 0.0
    %94 = vmatpush1.msra.mxu0 %v39
    %95 = vmatprep.subr.mxu0 0.0
    %96 = vmatpush1.msra.mxu0 %v38
    %97 = vmatprep.subr.mxu0 0.0
    %98 = vmatpush1.msra.mxu0 %v37
    %99 = vmatprep.subr.mxu0 0.0
    %100 = vmatpush2.msra.mxu0 0.0
    %101 = vmatprep.subr.mxu0 0.0
    %102 = vmatpush2.msra.mxu0 0.0
    %103 = vmatprep.subr.mxu0 0.0
    %104 = vmatpush2.msra.mxu0 0.0
    %105 = vmatprep.subr.mxu0 0.0
    %106 = vmatpush2.msra.mxu0 0.0
    %107 = vmatprep.subr.mxu0 0.0
    %108 = vmatpush2.msra.mxu0 0.0
    %109 = vmatprep.subr.mxu0 0.0
    %110 = vmatpush2.msra.mxu0 0.0
    %111 = vmatprep.subr.mxu0 0.0
    %112 = vmatpush2.msra.mxu0 0.0
    %113 = vmatprep.subr.mxu0 0.0
    %114 = vmatpush2.msra.mxu0 0.0
    %115 = vmatprep.subr.mxu0 0.0
    %116 = vmatpush2.msra.mxu0 0.0
    %117 = vmatprep.subr.mxu0 0.0
    %118 = vmatpush2.msra.mxu0 0.0
    %119 = vmatprep.subr.mxu0 0.0
    %120 = vmatpush2.msra.mxu0 0.0
    %121 = vmatprep.subr.mxu0 0.0
    %122 = vmatpush2.msra.mxu0 0.0
    %123 = vmatprep.subr.mxu0 0.0
    %124 = vmatpush2.msra.mxu0 0.0
    %125 = vmatprep.subr.mxu0 0.0
    %126 = vmatpush2.msra.mxu0 0.0
    %127 = vmatprep.subr.mxu0 0.0
    %128 = vmatpush2.msra.mxu0 0.0
    %129 = vmatprep.subr.mxu0 0.0
    %130 = vmatpush2.msra.mxu0 0.0
    %131 = vmatprep.mubr.f32.mxu0 0.0
    %132 = vmatmul.mubr.f32.gmra.mxu0 %v65
    %v133 = vpop.f32.mrf.mxu0
    %v134 = vadd.f32 0.0, %v133
    %v135 = vpop.f32.mrf.mxu0
    %136 = vdwg.mxu0
    %v137 = vadd.f32 %v62, %v134
    %v138 = vxor.u32 %v137, 2147483648
    %v139 = vmul.f32 %v138, 1.442695
    %v140 = vpow.pop %v139
    %v141 = vadd.f32 %v140, 1.0
    %v142 = vrcp.pop %v141
    %v143 = vmul.f32 1.0, %v142
    %v144 = vtanh.pop %v137
    %146 = vrot.lane.b32.xlu0 %v57, 32
    %v147 = vpop.permute.xlu0 %146
    %v149 = vmul.f32 %v143, %v147
    %151 = vrot.lane.b32.xlu0 %v144, 64
    %v152 = vpop.permute.xlu0 %151
    %v154 = vmul.f32 %v143, %v152
    %156 = vrot.lane.b32.xlu0 %v154, 32
    %v157 = vpop.permute.xlu0 %156
    %v159 = vadd.f32 %v149, %v157
    %v160 = vtanh.pop %v159
    %162 = vrot.lane.b32.xlu0 %v160, 64
    %v163 = vpop.permute.xlu0 %162
    %v165 = vmul.f32 %v143, %v163
    %v167 = vsel %vm63, %v59, 0
    %169 = vmatprep.subr.mxu0 0.0
    %170 = vmatpush1.msra.mxu0 0.0
    %171 = vmatprep.subr.mxu0 0.0
    %172 = vmatpush1.msra.mxu0 0.0
    %173 = vmatprep.subr.mxu0 0.0
    %174 = vmatpush1.msra.mxu0 0.0
    %175 = vmatprep.subr.mxu0 0.0
    %176 = vmatpush1.msra.mxu0 0.0
    %177 = vmatprep.subr.mxu0 0.0
    %178 = vmatpush1.msra.mxu0 0.0
    %179 = vmatprep.subr.mxu0 0.0
    %180 = vmatpush1.msra.mxu0 0.0
    %181 = vmatprep.subr.mxu0 0.0
    %182 = vmatpush1.msra.mxu0 0.0
    %183 = vmatprep.subr.mxu0 0.0
    %184 = vmatpush1.msra.mxu0 0.0
    %185 = vmatprep.subr.mxu0 0.0
    %186 = vmatpush1.msra.mxu0 0.0
    %187 = vmatprep.subr.mxu0 0.0
    %188 = vmatpush1.msra.mxu0 0.0
    %189 = vmatprep.subr.mxu0 0.0
    %190 = vmatpush1.msra.mxu0 0.0
    %191 = vmatprep.subr.mxu0 0.0
    %192 = vmatpush1.msra.mxu0 0.0
    %193 = vmatprep.subr.mxu0 0.0
    %194 = vmatpush1.msra.mxu0 %v48
    %195 = vmatprep.subr.mxu0 0.0
    %196 = vmatpush1.msra.mxu0 %v47
    %197 = vmatprep.subr.mxu0 0.0
    %198 = vmatpush1.msra.mxu0 %v46
    %199 = vmatprep.subr.mxu0 0.0
    %200 = vmatpush1.msra.mxu0 %v45
    %201 = vmatprep.subr.mxu0 0.0
    %202 = vmatpush2.msra.mxu0 0.0
    %203 = vmatprep.subr.mxu0 0.0
    %204 = vmatpush2.msra.mxu0 0.0
    %205 = vmatprep.subr.mxu0 0.0
    %206 = vmatpush2.msra.mxu0 0.0
    %207 = vmatprep.subr.mxu0 0.0
    %208 = vmatpush2.msra.mxu0 0.0
    %209 = vmatprep.subr.mxu0 0.0
    %210 = vmatpush2.msra.mxu0 0.0
    %211 = vmatprep.subr.mxu0 0.0
    %212 = vmatpush2.msra.mxu0 0.0
    %213 = vmatprep.subr.mxu0 0.0
    %214 = vmatpush2.msra.mxu0 0.0
    %215 = vmatprep.subr.mxu0 0.0
    %216 = vmatpush2.msra.mxu0 0.0
    %217 = vmatprep.subr.mxu0 0.0
    %218 = vmatpush2.msra.mxu0 0.0
    %219 = vmatprep.subr.mxu0 0.0
    %220 = vmatpush2.msra.mxu0 0.0
    %221 = vmatprep.subr.mxu0 0.0
    %222 = vmatpush2.msra.mxu0 0.0
    %223 = vmatprep.subr.mxu0 0.0
    %224 = vmatpush2.msra.mxu0 0.0
    %225 = vmatprep.subr.mxu0 0.0
    %226 = vmatpush2.msra.mxu0 0.0
    %227 = vmatprep.subr.mxu0 0.0
    %228 = vmatpush2.msra.mxu0 0.0
    %229 = vmatprep.subr.mxu0 0.0
    %230 = vmatpush2.msra.mxu0 0.0
    %231 = vmatprep.subr.mxu0 0.0
    %232 = vmatpush2.msra.mxu0 0.0
    %233 = vmatprep.mubr.f32.mxu0 0.0
    %234 = vmatmul.mubr.f32.gmra.mxu0 %v167
    %v235 = vpop.f32.mrf.mxu0
    %v236 = vadd.f32 0.0, %v235
    %v237 = vpop.f32.mrf.mxu0
    %238 = vdwg.mxu0
    %240 = vrot.lane.b32.xlu0 %v165, 32
    %v241 = vpop.permute.xlu0 %240
    %v242 = vsel %vm63, %v241, 0
    %244 = vmatprep.subr.mxu0 0.0
    %245 = vmatpush1.msra.mxu0 0.0
    %246 = vmatprep.subr.mxu0 0.0
    %247 = vmatpush1.msra.mxu0 0.0
    %248 = vmatprep.subr.mxu0 0.0
    %249 = vmatpush1.msra.mxu0 0.0
    %250 = vmatprep.subr.mxu0 0.0
    %251 = vmatpush1.msra.mxu0 0.0
    %252 = vmatprep.subr.mxu0 0.0
    %253 = vmatpush1.msra.mxu0 0.0
    %254 = vmatprep.subr.mxu0 0.0
    %255 = vmatpush1.msra.mxu0 0.0
    %256 = vmatprep.subr.mxu0 0.0
    %257 = vmatpush1.msra.mxu0 0.0
    %258 = vmatprep.subr.mxu0 0.0
    %259 = vmatpush1.msra.mxu0 0.0
    %260 = vmatprep.subr.mxu0 0.0
    %261 = vmatpush1.msra.mxu0 0.0
    %262 = vmatprep.subr.mxu0 0.0
    %263 = vmatpush1.msra.mxu0 0.0
    %264 = vmatprep.subr.mxu0 0.0
    %265 = vmatpush1.msra.mxu0 0.0
    %266 = vmatprep.subr.mxu0 0.0
    %267 = vmatpush1.msra.mxu0 0.0
    %268 = vmatprep.subr.mxu0 0.0
    %269 = vmatpush1.msra.mxu0 %v44
    %270 = vmatprep.subr.mxu0 0.0
    %271 = vmatpush1.msra.mxu0 %v43
    %272 = vmatprep.subr.mxu0 0.0
    %273 = vmatpush1.msra.mxu0 %v42
    %274 = vmatprep.subr.mxu0 0.0
    %275 = vmatpush1.msra.mxu0 %v41
    %276 = vmatprep.subr.mxu0 0.0
    %277 = vmatpush2.msra.mxu0 0.0
    %278 = vmatprep.subr.mxu0 0.0
    %279 = vmatpush2.msra.mxu0 0.0
    %280 = vmatprep.subr.mxu0 0.0
    %281 = vmatpush2.msra.mxu0 0.0
    %282 = vmatprep.subr.mxu0 0.0
    %283 = vmatpush2.msra.mxu0 0.0
    %284 = vmatprep.subr.mxu0 0.0
    %285 = vmatpush2.msra.mxu0 0.0
    %286 = vmatprep.subr.mxu0 0.0
    %287 = vmatpush2.msra.mxu0 0.0
    %288 = vmatprep.subr.mxu0 0.0
    %289 = vmatpush2.msra.mxu0 0.0
    %290 = vmatprep.subr.mxu0 0.0
    %291 = vmatpush2.msra.mxu0 0.0
    %292 = vmatprep.subr.mxu0 0.0
    %293 = vmatpush2.msra.mxu0 0.0
    %294 = vmatprep.subr.mxu0 0.0
    %295 = vmatpush2.msra.mxu0 0.0
    %296 = vmatprep.subr.mxu0 0.0
    %297 = vmatpush2.msra.mxu0 0.0
    %298 = vmatprep.subr.mxu0 0.0
    %299 = vmatpush2.msra.mxu0 0.0
    %300 = vmatprep.subr.mxu0 0.0
    %301 = vmatpush2.msra.mxu0 0.0
    %302 = vmatprep.subr.mxu0 0.0
    %303 = vmatpush2.msra.mxu0 0.0
    %304 = vmatprep.subr.mxu0 0.0
    %305 = vmatpush2.msra.mxu0 0.0
    %306 = vmatprep.subr.mxu0 0.0
    %307 = vmatpush2.msra.mxu0 0.0
    %308 = vmatprep.mubr.f32.mxu0 0.0
    %309 = vmatmul.mubr.f32.gmra.mxu0 %v242
    %v310 = vpop.f32.mrf.mxu0
    %v311 = vadd.f32 %v236, %v310
    %v312 = vpop.f32.mrf.mxu0
    %313 = vdwg.mxu0
    %v314 = vadd.f32 %v311, %v54
    %v315 = vxor.u32 %v314, 2147483648
    %v316 = vmul.f32 %v315, 1.442695
    %v317 = vpow.pop %v316
    %v318 = vadd.f32 %v317, 1.0
    %v319 = vrcp.pop %v318
    %v320 = vmul.f32 1.0, %v319
    %v321 = vtanh.pop %v314
    %323 = vrot.lane.b32.xlu0 %v61, 32
    %v324 = vpop.permute.xlu0 %323
    %v326 = vmul.f32 %v320, %v324
    %328 = vrot.lane.b32.xlu0 %v321, 64
    %v329 = vpop.permute.xlu0 %328
    %v331 = vmul.f32 %v320, %v329
    %333 = vrot.lane.b32.xlu0 %v331, 32
    %v334 = vpop.permute.xlu0 %333
    %v336 = vadd.f32 %v326, %v334
    %v337 = vtanh.pop %v336
    %339 = vrot.lane.b32.xlu0 %v337, 64
    %v340 = vpop.permute.xlu0 %339
    %v342 = vmul.f32 %v320, %v340
    %344 = vrot.lane.b32.xlu0 %v342, 32
    %v345 = vpop.permute.xlu0 %344
    %347 = vst.msk [vmem:[#allocation2] sm:$0xff] %vm63, %v345
    %s348 = scalar_lea.vmem %s0, 8
    %v349 = vld [vmem:[%s348] sm:$0xff]
    %350 = vmatprep.subr.mxu0 0.0
    %351 = vmatpush1.msra.mxu0 0.0
    %352 = vmatprep.subr.mxu0 0.0
    %353 = vmatpush1.msra.mxu0 0.0
    %354 = vmatprep.subr.mxu0 0.0
    %355 = vmatpush1.msra.mxu0 0.0
    %356 = vmatprep.subr.mxu0 0.0
    %357 = vmatpush1.msra.mxu0 0.0
    %358 = vmatprep.subr.mxu0 0.0
    %359 = vmatpush1.msra.mxu0 0.0
    %360 = vmatprep.subr.mxu0 0.0
    %361 = vmatpush1.msra.mxu0 0.0
    %362 = vmatprep.subr.mxu0 0.0
    %363 = vmatpush1.msra.mxu0 0.0
    %364 = vmatprep.subr.mxu0 0.0
    %365 = vmatpush1.msra.mxu0 0.0
    %366 = vmatprep.subr.mxu0 0.0
    %367 = vmatpush1.msra.mxu0 0.0
    %368 = vmatprep.subr.mxu0 0.0
    %369 = vmatpush1.msra.mxu0 0.0
    %370 = vmatprep.subr.mxu0 0.0
    %371 = vmatpush1.msra.mxu0 0.0
    %372 = vmatprep.subr.mxu0 0.0
    %373 = vmatpush1.msra.mxu0 0.0
    %374 = vmatprep.subr.mxu0 0.0
    %375 = vmatpush1.msra.mxu0 %v40
    %376 = vmatprep.subr.mxu0 0.0
    %377 = vmatpush1.msra.mxu0 %v39
    %378 = vmatprep.subr.mxu0 0.0
    %379 = vmatpush1.msra.mxu0 %v38
    %380 = vmatprep.subr.mxu0 0.0
    %381 = vmatpush1.msra.mxu0 %v37
    %382 = vmatprep.subr.mxu0 0.0
    %383 = vmatpush2.msra.mxu0 0.0
    %384 = vmatprep.subr.mxu0 0.0
    %385 = vmatpush2.msra.mxu0 0.0
    %386 = vmatprep.subr.mxu0 0.0
    %387 = vmatpush2.msra.mxu0 0.0
    %388 = vmatprep.subr.mxu0 0.0
    %389 = vmatpush2.msra.mxu0 0.0
    %390 = vmatprep.subr.mxu0 0.0
    %391 = vmatpush2.msra.mxu0 0.0
    %392 = vmatprep.subr.mxu0 0.0
    %393 = vmatpush2.msra.mxu0 0.0
    %394 = vmatprep.subr.mxu0 0.0
    %395 = vmatpush2.msra.mxu0 0.0
    %396 = vmatprep.subr.mxu0 0.0
    %397 = vmatpush2.msra.mxu0 0.0
    %398 = vmatprep.subr.mxu0 0.0
    %399 = vmatpush2.msra.mxu0 0.0
    %400 = vmatprep.subr.mxu0 0.0
    %401 = vmatpush2.msra.mxu0 0.0
    %402 = vmatprep.subr.mxu0 0.0
    %403 = vmatpush2.msra.mxu0 0.0
    %404 = vmatprep.subr.mxu0 0.0
    %405 = vmatpush2.msra.mxu0 0.0
    %406 = vmatprep.subr.mxu0 0.0
    %407 = vmatpush2.msra.mxu0 0.0
    %408 = vmatprep.subr.mxu0 0.0
    %409 = vmatpush2.msra.mxu0 0.0
    %410 = vmatprep.subr.mxu0 0.0
    %411 = vmatpush2.msra.mxu0 0.0
    %412 = vmatprep.subr.mxu0 0.0
    %413 = vmatpush2.msra.mxu0 0.0
    %414 = vmatprep.mubr.f32.mxu0 0.0
    %415 = vmatmul.mubr.f32.gmra.mxu0 %v242
    %v416 = vpop.f32.mrf.mxu0
    %v417 = vadd.f32 0.0, %v416
    %v418 = vpop.f32.mrf.mxu0
    %419 = vdwg.mxu0
    %v420 = vadd.f32 %v349, %v417
    %v421 = vxor.u32 %v420, 2147483648
    %v422 = vmul.f32 %v421, 1.442695
    %v423 = vpow.pop %v422
    %v424 = vadd.f32 %v423, 1.0
    %v425 = vrcp.pop %v424
    %v426 = vmul.f32 1.0, %v425
    %v427 = vtanh.pop %v420
    %v428 = vmul.f32 %v426, %v159
    %430 = vrot.lane.b32.xlu0 %v427, 64
    %v431 = vpop.permute.xlu0 %430
    %v433 = vmul.f32 %v426, %v431
    %435 = vrot.lane.b32.xlu0 %v433, 32
    %v436 = vpop.permute.xlu0 %435
    %v438 = vadd.f32 %v428, %v436
    %v439 = vtanh.pop %v438
    %441 = vrot.lane.b32.xlu0 %v439, 64
    %v442 = vpop.permute.xlu0 %441
    %v444 = vmul.f32 %v426, %v442
    %v445 = vsel %vm63, %v345, 0
    %447 = vmatprep.subr.mxu0 0.0
    %448 = vmatpush1.msra.mxu0 0.0
    %449 = vmatprep.subr.mxu0 0.0
    %450 = vmatpush1.msra.mxu0 0.0
    %451 = vmatprep.subr.mxu0 0.0
    %452 = vmatpush1.msra.mxu0 0.0
    %453 = vmatprep.subr.mxu0 0.0
    %454 = vmatpush1.msra.mxu0 0.0
    %455 = vmatprep.subr.mxu0 0.0
    %456 = vmatpush1.msra.mxu0 0.0
    %457 = vmatprep.subr.mxu0 0.0
    %458 = vmatpush1.msra.mxu0 0.0
    %459 = vmatprep.subr.mxu0 0.0
    %460 = vmatpush1.msra.mxu0 0.0
    %461 = vmatprep.subr.mxu0 0.0
    %462 = vmatpush1.msra.mxu0 0.0
    %463 = vmatprep.subr.mxu0 0.0
    %464 = vmatpush1.msra.mxu0 0.0
    %465 = vmatprep.subr.mxu0 0.0
    %466 = vmatpush1.msra.mxu0 0.0
    %467 = vmatprep.subr.mxu0 0.0
    %468 = vmatpush1.msra.mxu0 0.0
    %469 = vmatprep.subr.mxu0 0.0
    %470 = vmatpush1.msra.mxu0 0.0
    %471 = vmatprep.subr.mxu0 0.0
    %472 = vmatpush1.msra.mxu0 %v48
    %473 = vmatprep.subr.mxu0 0.0
    %474 = vmatpush1.msra.mxu0 %v47
    %475 = vmatprep.subr.mxu0 0.0
    %476 = vmatpush1.msra.mxu0 %v46
    %477 = vmatprep.subr.mxu0 0.0
    %478 = vmatpush1.msra.mxu0 %v45
    %479 = vmatprep.subr.mxu0 0.0
    %480 = vmatpush2.msra.mxu0 0.0
    %481 = vmatprep.subr.mxu0 0.0
    %482 = vmatpush2.msra.mxu0 0.0
    %483 = vmatprep.subr.mxu0 0.0
    %484 = vmatpush2.msra.mxu0 0.0
    %485 = vmatprep.subr.mxu0 0.0
    %486 = vmatpush2.msra.mxu0 0.0
    %487 = vmatprep.subr.mxu0 0.0
    %488 = vmatpush2.msra.mxu0 0.0
    %489 = vmatprep.subr.mxu0 0.0
    %490 = vmatpush2.msra.mxu0 0.0
    %491 = vmatprep.subr.mxu0 0.0
    %492 = vmatpush2.msra.mxu0 0.0
    %493 = vmatprep.subr.mxu0 0.0
    %494 = vmatpush2.msra.mxu0 0.0
    %495 = vmatprep.subr.mxu0 0.0
    %496 = vmatpush2.msra.mxu0 0.0
    %497 = vmatprep.subr.mxu0 0.0
    %498 = vmatpush2.msra.mxu0 0.0
    %499 = vmatprep.subr.mxu0 0.0
    %500 = vmatpush2.msra.mxu0 0.0
    %501 = vmatprep.subr.mxu0 0.0
    %502 = vmatpush2.msra.mxu0 0.0
    %503 = vmatprep.subr.mxu0 0.0
    %504 = vmatpush2.msra.mxu0 0.0
    %505 = vmatprep.subr.mxu0 0.0
    %506 = vmatpush2.msra.mxu0 0.0
    %507 = vmatprep.subr.mxu0 0.0
    %508 = vmatpush2.msra.mxu0 0.0
    %509 = vmatprep.subr.mxu0 0.0
    %510 = vmatpush2.msra.mxu0 0.0
    %511 = vmatprep.mubr.f32.mxu0 0.0
    %512 = vmatmul.mubr.f32.gmra.mxu0 %v445
    %v513 = vpop.f32.mrf.mxu0
    %v514 = vadd.f32 0.0, %v513
    %v515 = vpop.f32.mrf.mxu0
    %516 = vdwg.mxu0
    %518 = vrot.lane.b32.xlu0 %v444, 32
    %v519 = vpop.permute.xlu0 %518
    %v520 = vsel %vm63, %v519, 0
    %522 = vmatprep.subr.mxu0 0.0
    %523 = vmatpush1.msra.mxu0 0.0
    %524 = vmatprep.subr.mxu0 0.0
    %525 = vmatpush1.msra.mxu0 0.0
    %526 = vmatprep.subr.mxu0 0.0
    %527 = vmatpush1.msra.mxu0 0.0
    %528 = vmatprep.subr.mxu0 0.0
    %529 = vmatpush1.msra.mxu0 0.0
    %530 = vmatprep.subr.mxu0 0.0
    %531 = vmatpush1.msra.mxu0 0.0
    %532 = vmatprep.subr.mxu0 0.0
    %533 = vmatpush1.msra.mxu0 0.0
    %534 = vmatprep.subr.mxu0 0.0
    %535 = vmatpush1.msra.mxu0 0.0
    %536 = vmatprep.subr.mxu0 0.0
    %537 = vmatpush1.msra.mxu0 0.0
    %538 = vmatprep.subr.mxu0 0.0
    %539 = vmatpush1.msra.mxu0 0.0
    %540 = vmatprep.subr.mxu0 0.0
    %541 = vmatpush1.msra.mxu0 0.0
    %542 = vmatprep.subr.mxu0 0.0
    %543 = vmatpush1.msra.mxu0 0.0
    %544 = vmatprep.subr.mxu0 0.0
    %545 = vmatpush1.msra.mxu0 0.0
    %546 = vmatprep.subr.mxu0 0.0
    %547 = vmatpush1.msra.mxu0 %v44
    %548 = vmatprep.subr.mxu0 0.0
    %549 = vmatpush1.msra.mxu0 %v43
    %550 = vmatprep.subr.mxu0 0.0
    %551 = vmatpush1.msra.mxu0 %v42
    %552 = vmatprep.subr.mxu0 0.0
    %553 = vmatpush1.msra.mxu0 %v41
    %554 = vmatprep.subr.mxu0 0.0
    %555 = vmatpush2.msra.mxu0 0.0
    %556 = vmatprep.subr.mxu0 0.0
    %557 = vmatpush2.msra.mxu0 0.0
    %558 = vmatprep.subr.mxu0 0.0
    %559 = vmatpush2.msra.mxu0 0.0
    %560 = vmatprep.subr.mxu0 0.0
    %561 = vmatpush2.msra.mxu0 0.0
    %562 = vmatprep.subr.mxu0 0.0
    %563 = vmatpush2.msra.mxu0 0.0
    %564 = vmatprep.subr.mxu0 0.0
    %565 = vmatpush2.msra.mxu0 0.0
    %566 = vmatprep.subr.mxu0 0.0
    %567 = vmatpush2.msra.mxu0 0.0
    %568 = vmatprep.subr.mxu0 0.0
    %569 = vmatpush2.msra.mxu0 0.0
    %570 = vmatprep.subr.mxu0 0.0
    %571 = vmatpush2.msra.mxu0 0.0
    %572 = vmatprep.subr.mxu0 0.0
    %573 = vmatpush2.msra.mxu0 0.0
    %574 = vmatprep.subr.mxu0 0.0
    %575 = vmatpush2.msra.mxu0 0.0
    %576 = vmatprep.subr.mxu0 0.0
    %577 = vmatpush2.msra.mxu0 0.0
    %578 = vmatprep.subr.mxu0 0.0
    %579 = vmatpush2.msra.mxu0 0.0
    %580 = vmatprep.subr.mxu0 0.0
    %581 = vmatpush2.msra.mxu0 0.0
    %582 = vmatprep.subr.mxu0 0.0
    %583 = vmatpush2.msra.mxu0 0.0
    %584 = vmatprep.subr.mxu0 0.0
    %585 = vmatpush2.msra.mxu0 0.0
    %586 = vmatprep.mubr.f32.mxu0 0.0
    %587 = vmatmul.mubr.f32.gmra.mxu0 %v520
    %v588 = vpop.f32.mrf.mxu0
    %v589 = vadd.f32 %v514, %v588
    %v590 = vpop.f32.mrf.mxu0
    %591 = vdwg.mxu0
    %v592 = vadd.f32 %v589, %v54
    %v593 = vxor.u32 %v592, 2147483648
    %v594 = vmul.f32 %v593, 1.442695
    %v595 = vpow.pop %v594
    %v596 = vadd.f32 %v595, 1.0
    %v597 = vrcp.pop %v596
    %v598 = vmul.f32 1.0, %v597
    %v599 = vtanh.pop %v592
    %v600 = vmul.f32 %v598, %v336
    %602 = vrot.lane.b32.xlu0 %v599, 64
    %v603 = vpop.permute.xlu0 %602
    %v605 = vmul.f32 %v598, %v603
    %607 = vrot.lane.b32.xlu0 %v605, 32
    %v608 = vpop.permute.xlu0 %607
    %v610 = vadd.f32 %v600, %v608
    %v611 = vtanh.pop %v610
    %613 = vrot.lane.b32.xlu0 %v611, 64
    %v614 = vpop.permute.xlu0 %613
    %v616 = vmul.f32 %v598, %v614
    %618 = vrot.lane.b32.xlu0 %v616, 32
    %v619 = vpop.permute.xlu0 %618
    %621 = vst.msk [vmem:[#allocation2 + $0x8] sm:$0xff] %vm63, %v619
    %s622 = scalar_lea.vmem %s0, 16
    %v623 = vld [vmem:[%s622] sm:$0xff]
    %624 = vmatprep.subr.mxu0 0.0
    %625 = vmatpush1.msra.mxu0 0.0
    %626 = vmatprep.subr.mxu0 0.0
    %627 = vmatpush1.msra.mxu0 0.0
    %628 = vmatprep.subr.mxu0 0.0
    %629 = vmatpush1.msra.mxu0 0.0
    %630 = vmatprep.subr.mxu0 0.0
    %631 = vmatpush1.msra.mxu0 0.0
    %632 = vmatprep.subr.mxu0 0.0
    %633 = vmatpush1.msra.mxu0 0.0
    %634 = vmatprep.subr.mxu0 0.0
    %635 = vmatpush1.msra.mxu0 0.0
    %636 = vmatprep.subr.mxu0 0.0
    %637 = vmatpush1.msra.mxu0 0.0
    %638 = vmatprep.subr.mxu0 0.0
    %639 = vmatpush1.msra.mxu0 0.0
    %640 = vmatprep.subr.mxu0 0.0
    %641 = vmatpush1.msra.mxu0 0.0
    %642 = vmatprep.subr.mxu0 0.0
    %643 = vmatpush1.msra.mxu0 0.0
    %644 = vmatprep.subr.mxu0 0.0
    %645 = vmatpush1.msra.mxu0 0.0
    %646 = vmatprep.subr.mxu0 0.0
    %647 = vmatpush1.msra.mxu0 0.0
    %648 = vmatprep.subr.mxu0 0.0
    %649 = vmatpush1.msra.mxu0 %v40
    %650 = vmatprep.subr.mxu0 0.0
    %651 = vmatpush1.msra.mxu0 %v39
    %652 = vmatprep.subr.mxu0 0.0
    %653 = vmatpush1.msra.mxu0 %v38
    %654 = vmatprep.subr.mxu0 0.0
    %655 = vmatpush1.msra.mxu0 %v37
    %656 = vmatprep.subr.mxu0 0.0
    %657 = vmatpush2.msra.mxu0 0.0
    %658 = vmatprep.subr.mxu0 0.0
    %659 = vmatpush2.msra.mxu0 0.0
    %660 = vmatprep.subr.mxu0 0.0
    %661 = vmatpush2.msra.mxu0 0.0
    %662 = vmatprep.subr.mxu0 0.0
    %663 = vmatpush2.msra.mxu0 0.0
    %664 = vmatprep.subr.mxu0 0.0
    %665 = vmatpush2.msra.mxu0 0.0
    %666 = vmatprep.subr.mxu0 0.0
    %667 = vmatpush2.msra.mxu0 0.0
    %668 = vmatprep.subr.mxu0 0.0
    %669 = vmatpush2.msra.mxu0 0.0
    %670 = vmatprep.subr.mxu0 0.0
    %671 = vmatpush2.msra.mxu0 0.0
    %672 = vmatprep.subr.mxu0 0.0
    %673 = vmatpush2.msra.mxu0 0.0
    %674 = vmatprep.subr.mxu0 0.0
    %675 = vmatpush2.msra.mxu0 0.0
    %676 = vmatprep.subr.mxu0 0.0
    %677 = vmatpush2.msra.mxu0 0.0
    %678 = vmatprep.subr.mxu0 0.0
    %679 = vmatpush2.msra.mxu0 0.0
    %680 = vmatprep.subr.mxu0 0.0
    %681 = vmatpush2.msra.mxu0 0.0
    %682 = vmatprep.subr.mxu0 0.0
    %683 = vmatpush2.msra.mxu0 0.0
    %684 = vmatprep.subr.mxu0 0.0
    %685 = vmatpush2.msra.mxu0 0.0
    %686 = vmatprep.subr.mxu0 0.0
    %687 = vmatpush2.msra.mxu0 0.0
    %688 = vmatprep.mubr.f32.mxu0 0.0
    %689 = vmatmul.mubr.f32.gmra.mxu0 %v520
    %v690 = vpop.f32.mrf.mxu0
    %v691 = vadd.f32 0.0, %v690
    %v692 = vpop.f32.mrf.mxu0
    %693 = vdwg.mxu0
    %v694 = vadd.f32 %v623, %v691
    %v695 = vxor.u32 %v694, 2147483648
    %v696 = vmul.f32 %v695, 1.442695
    %v697 = vpow.pop %v696
    %v698 = vadd.f32 %v697, 1.0
    %v699 = vrcp.pop %v698
    %v700 = vmul.f32 1.0, %v699
    %v701 = vtanh.pop %v694
    %v702 = vmul.f32 %v700, %v438
    %704 = vrot.lane.b32.xlu0 %v701, 64
    %v705 = vpop.permute.xlu0 %704
    %v707 = vmul.f32 %v700, %v705
    %709 = vrot.lane.b32.xlu0 %v707, 32
    %v710 = vpop.permute.xlu0 %709
    %v712 = vadd.f32 %v702, %v710
    %v713 = vtanh.pop %v712
    %715 = vrot.lane.b32.xlu0 %v713, 64
    %v716 = vpop.permute.xlu0 %715
    %v718 = vmul.f32 %v700, %v716
    %v719 = vsel %vm63, %v619, 0
    %721 = vmatprep.subr.mxu0 0.0
    %722 = vmatpush1.msra.mxu0 0.0
    %723 = vmatprep.subr.mxu0 0.0
    %724 = vmatpush1.msra.mxu0 0.0
    %725 = vmatprep.subr.mxu0 0.0
    %726 = vmatpush1.msra.mxu0 0.0
    %727 = vmatprep.subr.mxu0 0.0
    %728 = vmatpush1.msra.mxu0 0.0
    %729 = vmatprep.subr.mxu0 0.0
    %730 = vmatpush1.msra.mxu0 0.0
    %731 = vmatprep.subr.mxu0 0.0
    %732 = vmatpush1.msra.mxu0 0.0
    %733 = vmatprep.subr.mxu0 0.0
    %734 = vmatpush1.msra.mxu0 0.0
    %735 = vmatprep.subr.mxu0 0.0
    %736 = vmatpush1.msra.mxu0 0.0
    %737 = vmatprep.subr.mxu0 0.0
    %738 = vmatpush1.msra.mxu0 0.0
    %739 = vmatprep.subr.mxu0 0.0
    %740 = vmatpush1.msra.mxu0 0.0
    %741 = vmatprep.subr.mxu0 0.0
    %742 = vmatpush1.msra.mxu0 0.0
    %743 = vmatprep.subr.mxu0 0.0
    %744 = vmatpush1.msra.mxu0 0.0
    %745 = vmatprep.subr.mxu0 0.0
    %746 = vmatpush1.msra.mxu0 %v48
    %747 = vmatprep.subr.mxu0 0.0
    %748 = vmatpush1.msra.mxu0 %v47
    %749 = vmatprep.subr.mxu0 0.0
    %750 = vmatpush1.msra.mxu0 %v46
    %751 = vmatprep.subr.mxu0 0.0
    %752 = vmatpush1.msra.mxu0 %v45
    %753 = vmatprep.subr.mxu0 0.0
    %754 = vmatpush2.msra.mxu0 0.0
    %755 = vmatprep.subr.mxu0 0.0
    %756 = vmatpush2.msra.mxu0 0.0
    %757 = vmatprep.subr.mxu0 0.0
    %758 = vmatpush2.msra.mxu0 0.0
    %759 = vmatprep.subr.mxu0 0.0
    %760 = vmatpush2.msra.mxu0 0.0
    %761 = vmatprep.subr.mxu0 0.0
    %762 = vmatpush2.msra.mxu0 0.0
    %763 = vmatprep.subr.mxu0 0.0
    %764 = vmatpush2.msra.mxu0 0.0
    %765 = vmatprep.subr.mxu0 0.0
    %766 = vmatpush2.msra.mxu0 0.0
    %767 = vmatprep.subr.mxu0 0.0
    %768 = vmatpush2.msra.mxu0 0.0
    %769 = vmatprep.subr.mxu0 0.0
    %770 = vmatpush2.msra.mxu0 0.0
    %771 = vmatprep.subr.mxu0 0.0
    %772 = vmatpush2.msra.mxu0 0.0
    %773 = vmatprep.subr.mxu0 0.0
    %774 = vmatpush2.msra.mxu0 0.0
    %775 = vmatprep.subr.mxu0 0.0
    %776 = vmatpush2.msra.mxu0 0.0
    %777 = vmatprep.subr.mxu0 0.0
    %778 = vmatpush2.msra.mxu0 0.0
    %779 = vmatprep.subr.mxu0 0.0
    %780 = vmatpush2.msra.mxu0 0.0
    %781 = vmatprep.subr.mxu0 0.0
    %782 = vmatpush2.msra.mxu0 0.0
    %783 = vmatprep.subr.mxu0 0.0
    %784 = vmatpush2.msra.mxu0 0.0
    %785 = vmatprep.mubr.f32.mxu0 0.0
    %786 = vmatmul.mubr.f32.gmra.mxu0 %v719
    %v787 = vpop.f32.mrf.mxu0
    %v788 = vadd.f32 0.0, %v787
    %v789 = vpop.f32.mrf.mxu0
    %790 = vdwg.mxu0
    %792 = vrot.lane.b32.xlu0 %v718, 32
    %v793 = vpop.permute.xlu0 %792
    %v794 = vsel %vm63, %v793, 0
    %796 = vmatprep.subr.mxu0 0.0
    %797 = vmatpush1.msra.mxu0 0.0
    %798 = vmatprep.subr.mxu0 0.0
    %799 = vmatpush1.msra.mxu0 0.0
    %800 = vmatprep.subr.mxu0 0.0
    %801 = vmatpush1.msra.mxu0 0.0
    %802 = vmatprep.subr.mxu0 0.0
    %803 = vmatpush1.msra.mxu0 0.0
    %804 = vmatprep.subr.mxu0 0.0
    %805 = vmatpush1.msra.mxu0 0.0
    %806 = vmatprep.subr.mxu0 0.0
    %807 = vmatpush1.msra.mxu0 0.0
    %808 = vmatprep.subr.mxu0 0.0
    %809 = vmatpush1.msra.mxu0 0.0
    %810 = vmatprep.subr.mxu0 0.0
    %811 = vmatpush1.msra.mxu0 0.0
    %812 = vmatprep.subr.mxu0 0.0
    %813 = vmatpush1.msra.mxu0 0.0
    %814 = vmatprep.subr.mxu0 0.0
    %815 = vmatpush1.msra.mxu0 0.0
    %816 = vmatprep.subr.mxu0 0.0
    %817 = vmatpush1.msra.mxu0 0.0
    %818 = vmatprep.subr.mxu0 0.0
    %819 = vmatpush1.msra.mxu0 0.0
    %820 = vmatprep.subr.mxu0 0.0
    %821 = vmatpush1.msra.mxu0 %v44
    %822 = vmatprep.subr.mxu0 0.0
    %823 = vmatpush1.msra.mxu0 %v43
    %824 = vmatprep.subr.mxu0 0.0
    %825 = vmatpush1.msra.mxu0 %v42
    %826 = vmatprep.subr.mxu0 0.0
    %827 = vmatpush1.msra.mxu0 %v41
    %828 = vmatprep.subr.mxu0 0.0
    %829 = vmatpush2.msra.mxu0 0.0
    %830 = vmatprep.subr.mxu0 0.0
    %831 = vmatpush2.msra.mxu0 0.0
    %832 = vmatprep.subr.mxu0 0.0
    %833 = vmatpush2.msra.mxu0 0.0
    %834 = vmatprep.subr.mxu0 0.0
    %835 = vmatpush2.msra.mxu0 0.0
    %836 = vmatprep.subr.mxu0 0.0
    %837 = vmatpush2.msra.mxu0 0.0
    %838 = vmatprep.subr.mxu0 0.0
    %839 = vmatpush2.msra.mxu0 0.0
    %840 = vmatprep.subr.mxu0 0.0
    %841 = vmatpush2.msra.mxu0 0.0
    %842 = vmatprep.subr.mxu0 0.0
    %843 = vmatpush2.msra.mxu0 0.0
    %844 = vmatprep.subr.mxu0 0.0
    %845 = vmatpush2.msra.mxu0 0.0
    %846 = vmatprep.subr.mxu0 0.0
    %847 = vmatpush2.msra.mxu0 0.0
    %848 = vmatprep.subr.mxu0 0.0
    %849 = vmatpush2.msra.mxu0 0.0
    %850 = vmatprep.subr.mxu0 0.0
    %851 = vmatpush2.msra.mxu0 0.0
    %852 = vmatprep.subr.mxu0 0.0
    %853 = vmatpush2.msra.mxu0 0.0
    %854 = vmatprep.subr.mxu0 0.0
    %855 = vmatpush2.msra.mxu0 0.0
    %856 = vmatprep.subr.mxu0 0.0
    %857 = vmatpush2.msra.mxu0 0.0
    %858 = vmatprep.subr.mxu0 0.0
    %859 = vmatpush2.msra.mxu0 0.0
    %860 = vmatprep.mubr.f32.mxu0 0.0
    %861 = vmatmul.mubr.f32.gmra.mxu0 %v794
    %v862 = vpop.f32.mrf.mxu0
    %v863 = vadd.f32 %v788, %v862
    %v864 = vpop.f32.mrf.mxu0
    %865 = vdwg.mxu0
    %v866 = vadd.f32 %v863, %v54
    %v867 = vxor.u32 %v866, 2147483648
    %v868 = vmul.f32 %v867, 1.442695
    %v869 = vpow.pop %v868
    %v870 = vadd.f32 %v869, 1.0
    %v871 = vrcp.pop %v870
    %v872 = vmul.f32 1.0, %v871
    %v873 = vtanh.pop %v866
    %v874 = vmul.f32 %v872, %v610
    %876 = vrot.lane.b32.xlu0 %v873, 64
    %v877 = vpop.permute.xlu0 %876
    %v879 = vmul.f32 %v872, %v877
    %881 = vrot.lane.b32.xlu0 %v879, 32
    %v882 = vpop.permute.xlu0 %881
    %v884 = vadd.f32 %v874, %v882
    %v885 = vtanh.pop %v884
    %887 = vrot.lane.b32.xlu0 %v885, 64
    %v888 = vpop.permute.xlu0 %887
    %v890 = vmul.f32 %v872, %v888
    %892 = vrot.lane.b32.xlu0 %v890, 32
    %v893 = vpop.permute.xlu0 %892
    %895 = vst.msk [vmem:[#allocation2 + $0x10] sm:$0xff] %vm63, %v893
    %s896 = scalar_lea.vmem %s0, 24
    %v897 = vld [vmem:[%s896] sm:$0xff]
    %898 = vmatprep.subr.mxu0 0.0
    %899 = vmatpush1.msra.mxu0 0.0
    %900 = vmatprep.subr.mxu0 0.0
    %901 = vmatpush1.msra.mxu0 0.0
    %902 = vmatprep.subr.mxu0 0.0
    %903 = vmatpush1.msra.mxu0 0.0
    %904 = vmatprep.subr.mxu0 0.0
    %905 = vmatpush1.msra.mxu0 0.0
    %906 = vmatprep.subr.mxu0 0.0
    %907 = vmatpush1.msra.mxu0 0.0
    %908 = vmatprep.subr.mxu0 0.0
    %909 = vmatpush1.msra.mxu0 0.0
    %910 = vmatprep.subr.mxu0 0.0
    %911 = vmatpush1.msra.mxu0 0.0
    %912 = vmatprep.subr.mxu0 0.0
    %913 = vmatpush1.msra.mxu0 0.0
    %914 = vmatprep.subr.mxu0 0.0
    %915 = vmatpush1.msra.mxu0 0.0
    %916 = vmatprep.subr.mxu0 0.0
    %917 = vmatpush1.msra.mxu0 0.0
    %918 = vmatprep.subr.mxu0 0.0
    %919 = vmatpush1.msra.mxu0 0.0
    %920 = vmatprep.subr.mxu0 0.0
    %921 = vmatpush1.msra.mxu0 0.0
    %922 = vmatprep.subr.mxu0 0.0
    %923 = vmatpush1.msra.mxu0 %v40
    %924 = vmatprep.subr.mxu0 0.0
    %925 = vmatpush1.msra.mxu0 %v39
    %926 = vmatprep.subr.mxu0 0.0
    %927 = vmatpush1.msra.mxu0 %v38
    %928 = vmatprep.subr.mxu0 0.0
    %929 = vmatpush1.msra.mxu0 %v37
    %930 = vmatprep.subr.mxu0 0.0
    %931 = vmatpush2.msra.mxu0 0.0
    %932 = vmatprep.subr.mxu0 0.0
    %933 = vmatpush2.msra.mxu0 0.0
    %934 = vmatprep.subr.mxu0 0.0
    %935 = vmatpush2.msra.mxu0 0.0
    %936 = vmatprep.subr.mxu0 0.0
    %937 = vmatpush2.msra.mxu0 0.0
    %938 = vmatprep.subr.mxu0 0.0
    %939 = vmatpush2.msra.mxu0 0.0
    %940 = vmatprep.subr.mxu0 0.0
    %941 = vmatpush2.msra.mxu0 0.0
    %942 = vmatprep.subr.mxu0 0.0
    %943 = vmatpush2.msra.mxu0 0.0
    %944 = vmatprep.subr.mxu0 0.0
    %945 = vmatpush2.msra.mxu0 0.0
    %946 = vmatprep.subr.mxu0 0.0
    %947 = vmatpush2.msra.mxu0 0.0
    %948 = vmatprep.subr.mxu0 0.0
    %949 = vmatpush2.msra.mxu0 0.0
    %950 = vmatprep.subr.mxu0 0.0
    %951 = vmatpush2.msra.mxu0 0.0
    %952 = vmatprep.subr.mxu0 0.0
    %953 = vmatpush2.msra.mxu0 0.0
    %954 = vmatprep.subr.mxu0 0.0
    %955 = vmatpush2.msra.mxu0 0.0
    %956 = vmatprep.subr.mxu0 0.0
    %957 = vmatpush2.msra.mxu0 0.0
    %958 = vmatprep.subr.mxu0 0.0
    %959 = vmatpush2.msra.mxu0 0.0
    %960 = vmatprep.subr.mxu0 0.0
    %961 = vmatpush2.msra.mxu0 0.0
    %962 = vmatprep.mubr.f32.mxu0 0.0
    %963 = vmatmul.mubr.f32.gmra.mxu0 %v794
    %v964 = vpop.f32.mrf.mxu0
    %v965 = vadd.f32 0.0, %v964
    %v966 = vpop.f32.mrf.mxu0
    %967 = vdwg.mxu0
    %v968 = vadd.f32 %v897, %v965
    %v969 = vxor.u32 %v968, 2147483648
    %v970 = vmul.f32 %v969, 1.442695
    %v971 = vpow.pop %v970
    %v972 = vadd.f32 %v971, 1.0
    %v973 = vrcp.pop %v972
    %v974 = vmul.f32 1.0, %v973
    %v975 = vtanh.pop %v968
    %v976 = vmul.f32 %v974, %v712
    %978 = vrot.lane.b32.xlu0 %v975, 64
    %v979 = vpop.permute.xlu0 %978
    %v981 = vmul.f32 %v974, %v979
    %983 = vrot.lane.b32.xlu0 %v981, 32
    %v984 = vpop.permute.xlu0 %983
    %v986 = vadd.f32 %v976, %v984
    %v987 = vtanh.pop %v986
    %989 = vrot.lane.b32.xlu0 %v987, 64
    %v990 = vpop.permute.xlu0 %989
    %v992 = vmul.f32 %v974, %v990
    %v993 = vsel %vm63, %v893, 0
    %995 = vmatprep.subr.mxu0 0.0
    %996 = vmatpush1.msra.mxu0 0.0
    %997 = vmatprep.subr.mxu0 0.0
    %998 = vmatpush1.msra.mxu0 0.0
    %999 = vmatprep.subr.mxu0 0.0
    %1000 = vmatpush1.msra.mxu0 0.0
    %1001 = vmatprep.subr.mxu0 0.0
    %1002 = vmatpush1.msra.mxu0 0.0
    %1003 = vmatprep.subr.mxu0 0.0
    %1004 = vmatpush1.msra.mxu0 0.0
    %1005 = vmatprep.subr.mxu0 0.0
    %1006 = vmatpush1.msra.mxu0 0.0
    %1007 = vmatprep.subr.mxu0 0.0
    %1008 = vmatpush1.msra.mxu0 0.0
    %1009 = vmatprep.subr.mxu0 0.0
    %1010 = vmatpush1.msra.mxu0 0.0
    %1011 = vmatprep.subr.mxu0 0.0
    %1012 = vmatpush1.msra.mxu0 0.0
    %1013 = vmatprep.subr.mxu0 0.0
    %1014 = vmatpush1.msra.mxu0 0.0
    %1015 = vmatprep.subr.mxu0 0.0
    %1016 = vmatpush1.msra.mxu0 0.0
    %1017 = vmatprep.subr.mxu0 0.0
    %1018 = vmatpush1.msra.mxu0 0.0
    %1019 = vmatprep.subr.mxu0 0.0
    %1020 = vmatpush1.msra.mxu0 %v48
    %1021 = vmatprep.subr.mxu0 0.0
    %1022 = vmatpush1.msra.mxu0 %v47
    %1023 = vmatprep.subr.mxu0 0.0
    %1024 = vmatpush1.msra.mxu0 %v46
    %1025 = vmatprep.subr.mxu0 0.0
    %1026 = vmatpush1.msra.mxu0 %v45
    %1027 = vmatprep.subr.mxu0 0.0
    %1028 = vmatpush2.msra.mxu0 0.0
    %1029 = vmatprep.subr.mxu0 0.0
    %1030 = vmatpush2.msra.mxu0 0.0
    %1031 = vmatprep.subr.mxu0 0.0
    %1032 = vmatpush2.msra.mxu0 0.0
    %1033 = vmatprep.subr.mxu0 0.0
    %1034 = vmatpush2.msra.mxu0 0.0
    %1035 = vmatprep.subr.mxu0 0.0
    %1036 = vmatpush2.msra.mxu0 0.0
    %1037 = vmatprep.subr.mxu0 0.0
    %1038 = vmatpush2.msra.mxu0 0.0
    %1039 = vmatprep.subr.mxu0 0.0
    %1040 = vmatpush2.msra.mxu0 0.0
    %1041 = vmatprep.subr.mxu0 0.0
    %1042 = vmatpush2.msra.mxu0 0.0
    %1043 = vmatprep.subr.mxu0 0.0
    %1044 = vmatpush2.msra.mxu0 0.0
    %1045 = vmatprep.subr.mxu0 0.0
    %1046 = vmatpush2.msra.mxu0 0.0
    %1047 = vmatprep.subr.mxu0 0.0
    %1048 = vmatpush2.msra.mxu0 0.0
    %1049 = vmatprep.subr.mxu0 0.0
    %1050 = vmatpush2.msra.mxu0 0.0
    %1051 = vmatprep.subr.mxu0 0.0
    %1052 = vmatpush2.msra.mxu0 0.0
    %1053 = vmatprep.subr.mxu0 0.0
    %1054 = vmatpush2.msra.mxu0 0.0
    %1055 = vmatprep.subr.mxu0 0.0
    %1056 = vmatpush2.msra.mxu0 0.0
    %1057 = vmatprep.subr.mxu0 0.0
    %1058 = vmatpush2.msra.mxu0 0.0
    %1059 = vmatprep.mubr.f32.mxu0 0.0
    %1060 = vmatmul.mubr.f32.gmra.mxu0 %v993
    %v1061 = vpop.f32.mrf.mxu0
    %v1062 = vadd.f32 0.0, %v1061
    %v1063 = vpop.f32.mrf.mxu0
    %1064 = vdwg.mxu0
    %1066 = vrot.lane.b32.xlu0 %v992, 32
    %v1067 = vpop.permute.xlu0 %1066
    %v1068 = vsel %vm63, %v1067, 0
    %1070 = vmatprep.subr.mxu0 0.0
    %1071 = vmatpush1.msra.mxu0 0.0
    %1072 = vmatprep.subr.mxu0 0.0
    %1073 = vmatpush1.msra.mxu0 0.0
    %1074 = vmatprep.subr.mxu0 0.0
    %1075 = vmatpush1.msra.mxu0 0.0
    %1076 = vmatprep.subr.mxu0 0.0
    %1077 = vmatpush1.msra.mxu0 0.0
    %1078 = vmatprep.subr.mxu0 0.0
    %1079 = vmatpush1.msra.mxu0 0.0
    %1080 = vmatprep.subr.mxu0 0.0
    %1081 = vmatpush1.msra.mxu0 0.0
    %1082 = vmatprep.subr.mxu0 0.0
    %1083 = vmatpush1.msra.mxu0 0.0
    %1084 = vmatprep.subr.mxu0 0.0
    %1085 = vmatpush1.msra.mxu0 0.0
    %1086 = vmatprep.subr.mxu0 0.0
    %1087 = vmatpush1.msra.mxu0 0.0
    %1088 = vmatprep.subr.mxu0 0.0
    %1089 = vmatpush1.msra.mxu0 0.0
    %1090 = vmatprep.subr.mxu0 0.0
    %1091 = vmatpush1.msra.mxu0 0.0
    %1092 = vmatprep.subr.mxu0 0.0
    %1093 = vmatpush1.msra.mxu0 0.0
    %1094 = vmatprep.subr.mxu0 0.0
    %1095 = vmatpush1.msra.mxu0 %v44
    %1096 = vmatprep.subr.mxu0 0.0
    %1097 = vmatpush1.msra.mxu0 %v43
    %1098 = vmatprep.subr.mxu0 0.0
    %1099 = vmatpush1.msra.mxu0 %v42
    %1100 = vmatprep.subr.mxu0 0.0
    %1101 = vmatpush1.msra.mxu0 %v41
    %1102 = vmatprep.subr.mxu0 0.0
    %1103 = vmatpush2.msra.mxu0 0.0
    %1104 = vmatprep.subr.mxu0 0.0
    %1105 = vmatpush2.msra.mxu0 0.0
    %1106 = vmatprep.subr.mxu0 0.0
    %1107 = vmatpush2.msra.mxu0 0.0
    %1108 = vmatprep.subr.mxu0 0.0
    %1109 = vmatpush2.msra.mxu0 0.0
    %1110 = vmatprep.subr.mxu0 0.0
    %1111 = vmatpush2.msra.mxu0 0.0
    %1112 = vmatprep.subr.mxu0 0.0
    %1113 = vmatpush2.msra.mxu0 0.0
    %1114 = vmatprep.subr.mxu0 0.0
    %1115 = vmatpush2.msra.mxu0 0.0
    %1116 = vmatprep.subr.mxu0 0.0
    %1117 = vmatpush2.msra.mxu0 0.0
    %1118 = vmatprep.subr.mxu0 0.0
    %1119 = vmatpush2.msra.mxu0 0.0
    %1120 = vmatprep.subr.mxu0 0.0
    %1121 = vmatpush2.msra.mxu0 0.0
    %1122 = vmatprep.subr.mxu0 0.0
    %1123 = vmatpush2.msra.mxu0 0.0
    %1124 = vmatprep.subr.mxu0 0.0
    %1125 = vmatpush2.msra.mxu0 0.0
    %1126 = vmatprep.subr.mxu0 0.0
    %1127 = vmatpush2.msra.mxu0 0.0
    %1128 = vmatprep.subr.mxu0 0.0
    %1129 = vmatpush2.msra.mxu0 0.0
    %1130 = vmatprep.subr.mxu0 0.0
    %1131 = vmatpush2.msra.mxu0 0.0
    %1132 = vmatprep.subr.mxu0 0.0
    %1133 = vmatpush2.msra.mxu0 0.0
    %1134 = vmatprep.mubr.f32.mxu0 0.0
    %1135 = vmatmul.mubr.f32.gmra.mxu0 %v1068
    %v1136 = vpop.f32.mrf.mxu0
    %v1137 = vadd.f32 %v1062, %v1136
    %v1138 = vpop.f32.mrf.mxu0
    %1139 = vdwg.mxu0
    %v1140 = vadd.f32 %v1137, %v54
    %v1141 = vxor.u32 %v1140, 2147483648
    %v1142 = vmul.f32 %v1141, 1.442695
    %v1143 = vpow.pop %v1142
    %v1144 = vadd.f32 %v1143, 1.0
    %v1145 = vrcp.pop %v1144
    %v1146 = vmul.f32 1.0, %v1145
    %v1147 = vtanh.pop %v1140
    %v1148 = vmul.f32 %v1146, %v884
    %1150 = vrot.lane.b32.xlu0 %v1147, 64
    %v1151 = vpop.permute.xlu0 %1150
    %v1153 = vmul.f32 %v1146, %v1151
    %1155 = vrot.lane.b32.xlu0 %v1153, 32
    %v1156 = vpop.permute.xlu0 %1155
    %v1158 = vadd.f32 %v1148, %v1156
    %v1159 = vtanh.pop %v1158
    %1161 = vrot.lane.b32.xlu0 %v1159, 64
    %v1162 = vpop.permute.xlu0 %1161
    %v1164 = vmul.f32 %v1146, %v1162
    %1166 = vrot.lane.b32.xlu0 %v1164, 32
    %v1167 = vpop.permute.xlu0 %1166
    %1169 = vst.msk [vmem:[#allocation2 + $0x18] sm:$0xff] %vm63, %v1167
    %s1170 = scalar_lea.vmem %s0, 32
    %v1171 = vld [vmem:[%s1170] sm:$0xff]
    %1172 = vmatprep.subr.mxu0 0.0
    %1173 = vmatpush1.msra.mxu0 0.0
    %1174 = vmatprep.subr.mxu0 0.0
    %1175 = vmatpush1.msra.mxu0 0.0
    %1176 = vmatprep.subr.mxu0 0.0
    %1177 = vmatpush1.msra.mxu0 0.0
    %1178 = vmatprep.subr.mxu0 0.0
    %1179 = vmatpush1.msra.mxu0 0.0
    %1180 = vmatprep.subr.mxu0 0.0
    %1181 = vmatpush1.msra.mxu0 0.0
    %1182 = vmatprep.subr.mxu0 0.0
    %1183 = vmatpush1.msra.mxu0 0.0
    %1184 = vmatprep.subr.mxu0 0.0
    %1185 = vmatpush1.msra.mxu0 0.0
    %1186 = vmatprep.subr.mxu0 0.0
    %1187 = vmatpush1.msra.mxu0 0.0
    %1188 = vmatprep.subr.mxu0 0.0
    %1189 = vmatpush1.msra.mxu0 0.0
    %1190 = vmatprep.subr.mxu0 0.0
    %1191 = vmatpush1.msra.mxu0 0.0
    %1192 = vmatprep.subr.mxu0 0.0
    %1193 = vmatpush1.msra.mxu0 0.0
    %1194 = vmatprep.subr.mxu0 0.0
    %1195 = vmatpush1.msra.mxu0 0.0
    %1196 = vmatprep.subr.mxu0 0.0
    %1197 = vmatpush1.msra.mxu0 %v40
    %1198 = vmatprep.subr.mxu0 0.0
    %1199 = vmatpush1.msra.mxu0 %v39
    %1200 = vmatprep.subr.mxu0 0.0
    %1201 = vmatpush1.msra.mxu0 %v38
    %1202 = vmatprep.subr.mxu0 0.0
    %1203 = vmatpush1.msra.mxu0 %v37
    %1204 = vmatprep.subr.mxu0 0.0
    %1205 = vmatpush2.msra.mxu0 0.0
    %1206 = vmatprep.subr.mxu0 0.0
    %1207 = vmatpush2.msra.mxu0 0.0
    %1208 = vmatprep.subr.mxu0 0.0
    %1209 = vmatpush2.msra.mxu0 0.0
    %1210 = vmatprep.subr.mxu0 0.0
    %1211 = vmatpush2.msra.mxu0 0.0
    %1212 = vmatprep.subr.mxu0 0.0
    %1213 = vmatpush2.msra.mxu0 0.0
    %1214 = vmatprep.subr.mxu0 0.0
    %1215 = vmatpush2.msra.mxu0 0.0
    %1216 = vmatprep.subr.mxu0 0.0
    %1217 = vmatpush2.msra.mxu0 0.0
    %1218 = vmatprep.subr.mxu0 0.0
    %1219 = vmatpush2.msra.mxu0 0.0
    %1220 = vmatprep.subr.mxu0 0.0
    %1221 = vmatpush2.msra.mxu0 0.0
    %1222 = vmatprep.subr.mxu0 0.0
    %1223 = vmatpush2.msra.mxu0 0.0
    %1224 = vmatprep.subr.mxu0 0.0
    %1225 = vmatpush2.msra.mxu0 0.0
    %1226 = vmatprep.subr.mxu0 0.0
    %1227 = vmatpush2.msra.mxu0 0.0
    %1228 = vmatprep.subr.mxu0 0.0
    %1229 = vmatpush2.msra.mxu0 0.0
    %1230 = vmatprep.subr.mxu0 0.0
    %1231 = vmatpush2.msra.mxu0 0.0
    %1232 = vmatprep.subr.mxu0 0.0
    %1233 = vmatpush2.msra.mxu0 0.0
    %1234 = vmatprep.subr.mxu0 0.0
    %1235 = vmatpush2.msra.mxu0 0.0
    %1236 = vmatprep.mubr.f32.mxu0 0.0
    %1237 = vmatmul.mubr.f32.gmra.mxu0 %v1068
    %v1238 = vpop.f32.mrf.mxu0
    %v1239 = vadd.f32 0.0, %v1238
    %v1240 = vpop.f32.mrf.mxu0
    %1241 = vdwg.mxu0
    %v1242 = vadd.f32 %v1171, %v1239
    %v1243 = vxor.u32 %v1242, 2147483648
    %v1244 = vmul.f32 %v1243, 1.442695
    %v1245 = vpow.pop %v1244
    %v1246 = vadd.f32 %v1245, 1.0
    %v1247 = vrcp.pop %v1246
    %v1248 = vmul.f32 1.0, %v1247
    %v1249 = vtanh.pop %v1242
    %v1250 = vmul.f32 %v1248, %v986
    %1252 = vrot.lane.b32.xlu0 %v1249, 64
    %v1253 = vpop.permute.xlu0 %1252
    %v1255 = vmul.f32 %v1248, %v1253
    %1257 = vrot.lane.b32.xlu0 %v1255, 32
    %v1258 = vpop.permute.xlu0 %1257
    %v1260 = vadd.f32 %v1250, %v1258
    %v1261 = vtanh.pop %v1260
    %1263 = vrot.lane.b32.xlu0 %v1261, 64
    %v1264 = vpop.permute.xlu0 %1263
    %v1266 = vmul.f32 %v1248, %v1264
    %v1267 = vsel %vm63, %v1167, 0
    %1269 = vmatprep.subr.mxu0 0.0
    %1270 = vmatpush1.msra.mxu0 0.0
    %1271 = vmatprep.subr.mxu0 0.0
    %1272 = vmatpush1.msra.mxu0 0.0
    %1273 = vmatprep.subr.mxu0 0.0
    %1274 = vmatpush1.msra.mxu0 0.0
    %1275 = vmatprep.subr.mxu0 0.0
    %1276 = vmatpush1.msra.mxu0 0.0
    %1277 = vmatprep.subr.mxu0 0.0
    %1278 = vmatpush1.msra.mxu0 0.0
    %1279 = vmatprep.subr.mxu0 0.0
    %1280 = vmatpush1.msra.mxu0 0.0
    %1281 = vmatprep.subr.mxu0 0.0
    %1282 = vmatpush1.msra.mxu0 0.0
    %1283 = vmatprep.subr.mxu0 0.0
    %1284 = vmatpush1.msra.mxu0 0.0
    %1285 = vmatprep.subr.mxu0 0.0
    %1286 = vmatpush1.msra.mxu0 0.0
    %1287 = vmatprep.subr.mxu0 0.0
    %1288 = vmatpush1.msra.mxu0 0.0
    %1289 = vmatprep.subr.mxu0 0.0
    %1290 = vmatpush1.msra.mxu0 0.0
    %1291 = vmatprep.subr.mxu0 0.0
    %1292 = vmatpush1.msra.mxu0 0.0
    %1293 = vmatprep.subr.mxu0 0.0
    %1294 = vmatpush1.msra.mxu0 %v48
    %1295 = vmatprep.subr.mxu0 0.0
    %1296 = vmatpush1.msra.mxu0 %v47
    %1297 = vmatprep.subr.mxu0 0.0
    %1298 = vmatpush1.msra.mxu0 %v46
    %1299 = vmatprep.subr.mxu0 0.0
    %1300 = vmatpush1.msra.mxu0 %v45
    %1301 = vmatprep.subr.mxu0 0.0
    %1302 = vmatpush2.msra.mxu0 0.0
    %1303 = vmatprep.subr.mxu0 0.0
    %1304 = vmatpush2.msra.mxu0 0.0
    %1305 = vmatprep.subr.mxu0 0.0
    %1306 = vmatpush2.msra.mxu0 0.0
    %1307 = vmatprep.subr.mxu0 0.0
    %1308 = vmatpush2.msra.mxu0 0.0
    %1309 = vmatprep.subr.mxu0 0.0
    %1310 = vmatpush2.msra.mxu0 0.0
    %1311 = vmatprep.subr.mxu0 0.0
    %1312 = vmatpush2.msra.mxu0 0.0
    %1313 = vmatprep.subr.mxu0 0.0
    %1314 = vmatpush2.msra.mxu0 0.0
    %1315 = vmatprep.subr.mxu0 0.0
    %1316 = vmatpush2.msra.mxu0 0.0
    %1317 = vmatprep.subr.mxu0 0.0
    %1318 = vmatpush2.msra.mxu0 0.0
    %1319 = vmatprep.subr.mxu0 0.0
    %1320 = vmatpush2.msra.mxu0 0.0
    %1321 = vmatprep.subr.mxu0 0.0
    %1322 = vmatpush2.msra.mxu0 0.0
    %1323 = vmatprep.subr.mxu0 0.0
    %1324 = vmatpush2.msra.mxu0 0.0
    %1325 = vmatprep.subr.mxu0 0.0
    %1326 = vmatpush2.msra.mxu0 0.0
    %1327 = vmatprep.subr.mxu0 0.0
    %1328 = vmatpush2.msra.mxu0 0.0
    %1329 = vmatprep.subr.mxu0 0.0
    %1330 = vmatpush2.msra.mxu0 0.0
    %1331 = vmatprep.subr.mxu0 0.0
    %1332 = vmatpush2.msra.mxu0 0.0
    %1333 = vmatprep.mubr.f32.mxu0 0.0
    %1334 = vmatmul.mubr.f32.gmra.mxu0 %v1267
    %v1335 = vpop.f32.mrf.mxu0
    %v1336 = vadd.f32 0.0, %v1335
    %v1337 = vpop.f32.mrf.mxu0
    %1338 = vdwg.mxu0
    %1340 = vrot.lane.b32.xlu0 %v1266, 32
    %v1341 = vpop.permute.xlu0 %1340
    %v1342 = vsel %vm63, %v1341, 0
    %1344 = vmatprep.subr.mxu0 0.0
    %1345 = vmatpush1.msra.mxu0 0.0
    %1346 = vmatprep.subr.mxu0 0.0
    %1347 = vmatpush1.msra.mxu0 0.0
    %1348 = vmatprep.subr.mxu0 0.0
    %1349 = vmatpush1.msra.mxu0 0.0
    %1350 = vmatprep.subr.mxu0 0.0
    %1351 = vmatpush1.msra.mxu0 0.0
    %1352 = vmatprep.subr.mxu0 0.0
    %1353 = vmatpush1.msra.mxu0 0.0
    %1354 = vmatprep.subr.mxu0 0.0
    %1355 = vmatpush1.msra.mxu0 0.0
    %1356 = vmatprep.subr.mxu0 0.0
    %1357 = vmatpush1.msra.mxu0 0.0
    %1358 = vmatprep.subr.mxu0 0.0
    %1359 = vmatpush1.msra.mxu0 0.0
    %1360 = vmatprep.subr.mxu0 0.0
    %1361 = vmatpush1.msra.mxu0 0.0
    %1362 = vmatprep.subr.mxu0 0.0
    %1363 = vmatpush1.msra.mxu0 0.0
    %1364 = vmatprep.subr.mxu0 0.0
    %1365 = vmatpush1.msra.mxu0 0.0
    %1366 = vmatprep.subr.mxu0 0.0
    %1367 = vmatpush1.msra.mxu0 0.0
    %1368 = vmatprep.subr.mxu0 0.0
    %1369 = vmatpush1.msra.mxu0 %v44
    %1370 = vmatprep.subr.mxu0 0.0
    %1371 = vmatpush1.msra.mxu0 %v43
    %1372 = vmatprep.subr.mxu0 0.0
    %1373 = vmatpush1.msra.mxu0 %v42
    %1374 = vmatprep.subr.mxu0 0.0
    %1375 = vmatpush1.msra.mxu0 %v41
    %1376 = vmatprep.subr.mxu0 0.0
    %1377 = vmatpush2.msra.mxu0 0.0
    %1378 = vmatprep.subr.mxu0 0.0
    %1379 = vmatpush2.msra.mxu0 0.0
    %1380 = vmatprep.subr.mxu0 0.0
    %1381 = vmatpush2.msra.mxu0 0.0
    %1382 = vmatprep.subr.mxu0 0.0
    %1383 = vmatpush2.msra.mxu0 0.0
    %1384 = vmatprep.subr.mxu0 0.0
    %1385 = vmatpush2.msra.mxu0 0.0
    %1386 = vmatprep.subr.mxu0 0.0
    %1387 = vmatpush2.msra.mxu0 0.0
    %1388 = vmatprep.subr.mxu0 0.0
    %1389 = vmatpush2.msra.mxu0 0.0
    %1390 = vmatprep.subr.mxu0 0.0
    %1391 = vmatpush2.msra.mxu0 0.0
    %1392 = vmatprep.subr.mxu0 0.0
    %1393 = vmatpush2.msra.mxu0 0.0
    %1394 = vmatprep.subr.mxu0 0.0
    %1395 = vmatpush2.msra.mxu0 0.0
    %1396 = vmatprep.subr.mxu0 0.0
    %1397 = vmatpush2.msra.mxu0 0.0
    %1398 = vmatprep.subr.mxu0 0.0
    %1399 = vmatpush2.msra.mxu0 0.0
    %1400 = vmatprep.subr.mxu0 0.0
    %1401 = vmatpush2.msra.mxu0 0.0
    %1402 = vmatprep.subr.mxu0 0.0
    %1403 = vmatpush2.msra.mxu0 0.0
    %1404 = vmatprep.subr.mxu0 0.0
    %1405 = vmatpush2.msra.mxu0 0.0
    %1406 = vmatprep.subr.mxu0 0.0
    %1407 = vmatpush2.msra.mxu0 0.0
    %1408 = vmatprep.mubr.f32.mxu0 0.0
    %1409 = vmatmul.mubr.f32.gmra.mxu0 %v1342
    %v1410 = vpop.f32.mrf.mxu0
    %v1411 = vadd.f32 %v1336, %v1410
    %v1412 = vpop.f32.mrf.mxu0
    %1413 = vdwg.mxu0
    %v1414 = vadd.f32 %v1411, %v54
    %v1415 = vxor.u32 %v1414, 2147483648
    %v1416 = vmul.f32 %v1415, 1.442695
    %v1417 = vpow.pop %v1416
    %v1418 = vadd.f32 %v1417, 1.0
    %v1419 = vrcp.pop %v1418
    %v1420 = vmul.f32 1.0, %v1419
    %v1421 = vtanh.pop %v1414
    %v1422 = vmul.f32 %v1420, %v1158
    %1424 = vrot.lane.b32.xlu0 %v1421, 64
    %v1425 = vpop.permute.xlu0 %1424
    %v1427 = vmul.f32 %v1420, %v1425
    %1429 = vrot.lane.b32.xlu0 %v1427, 32
    %v1430 = vpop.permute.xlu0 %1429
    %v1432 = vadd.f32 %v1422, %v1430
    %v1433 = vtanh.pop %v1432
    %1435 = vrot.lane.b32.xlu0 %v1433, 64
    %v1436 = vpop.permute.xlu0 %1435
    %v1438 = vmul.f32 %v1420, %v1436
    %1440 = vrot.lane.b32.xlu0 %v1438, 32
    %v1441 = vpop.permute.xlu0 %1440
    %1443 = vst.msk [vmem:[#allocation2 + $0x20] sm:$0xff] %vm63, %v1441
    %s1444 = scalar_lea.vmem %s0, 40
    %v1445 = vld [vmem:[%s1444] sm:$0xff]
    %1446 = vmatprep.subr.mxu0 0.0
    %1447 = vmatpush1.msra.mxu0 0.0
    %1448 = vmatprep.subr.mxu0 0.0
    %1449 = vmatpush1.msra.mxu0 0.0
    %1450 = vmatprep.subr.mxu0 0.0
    %1451 = vmatpush1.msra.mxu0 0.0
    %1452 = vmatprep.subr.mxu0 0.0
    %1453 = vmatpush1.msra.mxu0 0.0
    %1454 = vmatprep.subr.mxu0 0.0
    %1455 = vmatpush1.msra.mxu0 0.0
    %1456 = vmatprep.subr.mxu0 0.0
    %1457 = vmatpush1.msra.mxu0 0.0
    %1458 = vmatprep.subr.mxu0 0.0
    %1459 = vmatpush1.msra.mxu0 0.0
    %1460 = vmatprep.subr.mxu0 0.0
    %1461 = vmatpush1.msra.mxu0 0.0
    %1462 = vmatprep.subr.mxu0 0.0
    %1463 = vmatpush1.msra.mxu0 0.0
    %1464 = vmatprep.subr.mxu0 0.0
    %1465 = vmatpush1.msra.mxu0 0.0
    %1466 = vmatprep.subr.mxu0 0.0
    %1467 = vmatpush1.msra.mxu0 0.0
    %1468 = vmatprep.subr.mxu0 0.0
    %1469 = vmatpush1.msra.mxu0 0.0
    %1470 = vmatprep.subr.mxu0 0.0
    %1471 = vmatpush1.msra.mxu0 %v40
    %1472 = vmatprep.subr.mxu0 0.0
    %1473 = vmatpush1.msra.mxu0 %v39
    %1474 = vmatprep.subr.mxu0 0.0
    %1475 = vmatpush1.msra.mxu0 %v38
    %1476 = vmatprep.subr.mxu0 0.0
    %1477 = vmatpush1.msra.mxu0 %v37
    %1478 = vmatprep.subr.mxu0 0.0
    %1479 = vmatpush2.msra.mxu0 0.0
    %1480 = vmatprep.subr.mxu0 0.0
    %1481 = vmatpush2.msra.mxu0 0.0
    %1482 = vmatprep.subr.mxu0 0.0
    %1483 = vmatpush2.msra.mxu0 0.0
    %1484 = vmatprep.subr.mxu0 0.0
    %1485 = vmatpush2.msra.mxu0 0.0
    %1486 = vmatprep.subr.mxu0 0.0
    %1487 = vmatpush2.msra.mxu0 0.0
    %1488 = vmatprep.subr.mxu0 0.0
    %1489 = vmatpush2.msra.mxu0 0.0
    %1490 = vmatprep.subr.mxu0 0.0
    %1491 = vmatpush2.msra.mxu0 0.0
    %1492 = vmatprep.subr.mxu0 0.0
    %1493 = vmatpush2.msra.mxu0 0.0
    %1494 = vmatprep.subr.mxu0 0.0
    %1495 = vmatpush2.msra.mxu0 0.0
    %1496 = vmatprep.subr.mxu0 0.0
    %1497 = vmatpush2.msra.mxu0 0.0
    %1498 = vmatprep.subr.mxu0 0.0
    %1499 = vmatpush2.msra.mxu0 0.0
    %1500 = vmatprep.subr.mxu0 0.0
    %1501 = vmatpush2.msra.mxu0 0.0
    %1502 = vmatprep.subr.mxu0 0.0
    %1503 = vmatpush2.msra.mxu0 0.0
    %1504 = vmatprep.subr.mxu0 0.0
    %1505 = vmatpush2.msra.mxu0 0.0
    %1506 = vmatprep.subr.mxu0 0.0
    %1507 = vmatpush2.msra.mxu0 0.0
    %1508 = vmatprep.subr.mxu0 0.0
    %1509 = vmatpush2.msra.mxu0 0.0
    %1510 = vmatprep.mubr.f32.mxu0 0.0
    %1511 = vmatmul.mubr.f32.gmra.mxu0 %v1342
    %v1512 = vpop.f32.mrf.mxu0
    %v1513 = vadd.f32 0.0, %v1512
    %v1514 = vpop.f32.mrf.mxu0
    %1515 = vdwg.mxu0
    %v1516 = vadd.f32 %v1445, %v1513
    %v1517 = vxor.u32 %v1516, 2147483648
    %v1518 = vmul.f32 %v1517, 1.442695
    %v1519 = vpow.pop %v1518
    %v1520 = vadd.f32 %v1519, 1.0
    %v1521 = vrcp.pop %v1520
    %v1522 = vmul.f32 1.0, %v1521
    %v1523 = vtanh.pop %v1516
    %v1524 = vmul.f32 %v1522, %v1260
    %1526 = vrot.lane.b32.xlu0 %v1523, 64
    %v1527 = vpop.permute.xlu0 %1526
    %v1529 = vmul.f32 %v1522, %v1527
    %1531 = vrot.lane.b32.xlu0 %v1529, 32
    %v1532 = vpop.permute.xlu0 %1531
    %v1534 = vadd.f32 %v1524, %v1532
    %v1535 = vtanh.pop %v1534
    %1537 = vrot.lane.b32.xlu0 %v1535, 64
    %v1538 = vpop.permute.xlu0 %1537
    %v1540 = vmul.f32 %v1522, %v1538
    %v1541 = vsel %vm63, %v1441, 0
    %1543 = vmatprep.subr.mxu0 0.0
    %1544 = vmatpush1.msra.mxu0 0.0
    %1545 = vmatprep.subr.mxu0 0.0
    %1546 = vmatpush1.msra.mxu0 0.0
    %1547 = vmatprep.subr.mxu0 0.0
    %1548 = vmatpush1.msra.mxu0 0.0
    %1549 = vmatprep.subr.mxu0 0.0
    %1550 = vmatpush1.msra.mxu0 0.0
    %1551 = vmatprep.subr.mxu0 0.0
    %1552 = vmatpush1.msra.mxu0 0.0
    %1553 = vmatprep.subr.mxu0 0.0
    %1554 = vmatpush1.msra.mxu0 0.0
    %1555 = vmatprep.subr.mxu0 0.0
    %1556 = vmatpush1.msra.mxu0 0.0
    %1557 = vmatprep.subr.mxu0 0.0
    %1558 = vmatpush1.msra.mxu0 0.0
    %1559 = vmatprep.subr.mxu0 0.0
    %1560 = vmatpush1.msra.mxu0 0.0
    %1561 = vmatprep.subr.mxu0 0.0
    %1562 = vmatpush1.msra.mxu0 0.0
    %1563 = vmatprep.subr.mxu0 0.0
    %1564 = vmatpush1.msra.mxu0 0.0
    %1565 = vmatprep.subr.mxu0 0.0
    %1566 = vmatpush1.msra.mxu0 0.0
    %1567 = vmatprep.subr.mxu0 0.0
    %1568 = vmatpush1.msra.mxu0 %v48
    %1569 = vmatprep.subr.mxu0 0.0
    %1570 = vmatpush1.msra.mxu0 %v47
    %1571 = vmatprep.subr.mxu0 0.0
    %1572 = vmatpush1.msra.mxu0 %v46
    %1573 = vmatprep.subr.mxu0 0.0
    %1574 = vmatpush1.msra.mxu0 %v45
    %1575 = vmatprep.subr.mxu0 0.0
    %1576 = vmatpush2.msra.mxu0 0.0
    %1577 = vmatprep.subr.mxu0 0.0
    %1578 = vmatpush2.msra.mxu0 0.0
    %1579 = vmatprep.subr.mxu0 0.0
    %1580 = vmatpush2.msra.mxu0 0.0
    %1581 = vmatprep.subr.mxu0 0.0
    %1582 = vmatpush2.msra.mxu0 0.0
    %1583 = vmatprep.subr.mxu0 0.0
    %1584 = vmatpush2.msra.mxu0 0.0
    %1585 = vmatprep.subr.mxu0 0.0
    %1586 = vmatpush2.msra.mxu0 0.0
    %1587 = vmatprep.subr.mxu0 0.0
    %1588 = vmatpush2.msra.mxu0 0.0
    %1589 = vmatprep.subr.mxu0 0.0
    %1590 = vmatpush2.msra.mxu0 0.0
    %1591 = vmatprep.subr.mxu0 0.0
    %1592 = vmatpush2.msra.mxu0 0.0
    %1593 = vmatprep.subr.mxu0 0.0
    %1594 = vmatpush2.msra.mxu0 0.0
    %1595 = vmatprep.subr.mxu0 0.0
    %1596 = vmatpush2.msra.mxu0 0.0
    %1597 = vmatprep.subr.mxu0 0.0
    %1598 = vmatpush2.msra.mxu0 0.0
    %1599 = vmatprep.subr.mxu0 0.0
    %1600 = vmatpush2.msra.mxu0 0.0
    %1601 = vmatprep.subr.mxu0 0.0
    %1602 = vmatpush2.msra.mxu0 0.0
    %1603 = vmatprep.subr.mxu0 0.0
    %1604 = vmatpush2.msra.mxu0 0.0
    %1605 = vmatprep.subr.mxu0 0.0
    %1606 = vmatpush2.msra.mxu0 0.0
    %1607 = vmatprep.mubr.f32.mxu0 0.0
    %1608 = vmatmul.mubr.f32.gmra.mxu0 %v1541
    %v1609 = vpop.f32.mrf.mxu0
    %v1610 = vadd.f32 0.0, %v1609
    %v1611 = vpop.f32.mrf.mxu0
    %1612 = vdwg.mxu0
    %1614 = vrot.lane.b32.xlu0 %v1540, 32
    %v1615 = vpop.permute.xlu0 %1614
    %v1616 = vsel %vm63, %v1615, 0
    %1618 = vmatprep.subr.mxu0 0.0
    %1619 = vmatpush1.msra.mxu0 0.0
    %1620 = vmatprep.subr.mxu0 0.0
    %1621 = vmatpush1.msra.mxu0 0.0
    %1622 = vmatprep.subr.mxu0 0.0
    %1623 = vmatpush1.msra.mxu0 0.0
    %1624 = vmatprep.subr.mxu0 0.0
    %1625 = vmatpush1.msra.mxu0 0.0
    %1626 = vmatprep.subr.mxu0 0.0
    %1627 = vmatpush1.msra.mxu0 0.0
    %1628 = vmatprep.subr.mxu0 0.0
    %1629 = vmatpush1.msra.mxu0 0.0
    %1630 = vmatprep.subr.mxu0 0.0
    %1631 = vmatpush1.msra.mxu0 0.0
    %1632 = vmatprep.subr.mxu0 0.0
    %1633 = vmatpush1.msra.mxu0 0.0
    %1634 = vmatprep.subr.mxu0 0.0
    %1635 = vmatpush1.msra.mxu0 0.0
    %1636 = vmatprep.subr.mxu0 0.0
    %1637 = vmatpush1.msra.mxu0 0.0
    %1638 = vmatprep.subr.mxu0 0.0
    %1639 = vmatpush1.msra.mxu0 0.0
    %1640 = vmatprep.subr.mxu0 0.0
    %1641 = vmatpush1.msra.mxu0 0.0
    %1642 = vmatprep.subr.mxu0 0.0
    %1643 = vmatpush1.msra.mxu0 %v44
    %1644 = vmatprep.subr.mxu0 0.0
    %1645 = vmatpush1.msra.mxu0 %v43
    %1646 = vmatprep.subr.mxu0 0.0
    %1647 = vmatpush1.msra.mxu0 %v42
    %1648 = vmatprep.subr.mxu0 0.0
    %1649 = vmatpush1.msra.mxu0 %v41
    %1650 = vmatprep.subr.mxu0 0.0
    %1651 = vmatpush2.msra.mxu0 0.0
    %1652 = vmatprep.subr.mxu0 0.0
    %1653 = vmatpush2.msra.mxu0 0.0
    %1654 = vmatprep.subr.mxu0 0.0
    %1655 = vmatpush2.msra.mxu0 0.0
    %1656 = vmatprep.subr.mxu0 0.0
    %1657 = vmatpush2.msra.mxu0 0.0
    %1658 = vmatprep.subr.mxu0 0.0
    %1659 = vmatpush2.msra.mxu0 0.0
    %1660 = vmatprep.subr.mxu0 0.0
    %1661 = vmatpush2.msra.mxu0 0.0
    %1662 = vmatprep.subr.mxu0 0.0
    %1663 = vmatpush2.msra.mxu0 0.0
    %1664 = vmatprep.subr.mxu0 0.0
    %1665 = vmatpush2.msra.mxu0 0.0
    %1666 = vmatprep.subr.mxu0 0.0
    %1667 = vmatpush2.msra.mxu0 0.0
    %1668 = vmatprep.subr.mxu0 0.0
    %1669 = vmatpush2.msra.mxu0 0.0
    %1670 = vmatprep.subr.mxu0 0.0
    %1671 = vmatpush2.msra.mxu0 0.0
    %1672 = vmatprep.subr.mxu0 0.0
    %1673 = vmatpush2.msra.mxu0 0.0
    %1674 = vmatprep.subr.mxu0 0.0
    %1675 = vmatpush2.msra.mxu0 0.0
    %1676 = vmatprep.subr.mxu0 0.0
    %1677 = vmatpush2.msra.mxu0 0.0
    %1678 = vmatprep.subr.mxu0 0.0
    %1679 = vmatpush2.msra.mxu0 0.0
    %1680 = vmatprep.subr.mxu0 0.0
    %1681 = vmatpush2.msra.mxu0 0.0
    %1682 = vmatprep.mubr.f32.mxu0 0.0
    %1683 = vmatmul.mubr.f32.gmra.mxu0 %v1616
    %v1684 = vpop.f32.mrf.mxu0
    %v1685 = vadd.f32 %v1610, %v1684
    %v1686 = vpop.f32.mrf.mxu0
    %1687 = vdwg.mxu0
    %v1688 = vadd.f32 %v1685, %v54
    %v1689 = vxor.u32 %v1688, 2147483648
    %v1690 = vmul.f32 %v1689, 1.442695
    %v1691 = vpow.pop %v1690
    %v1692 = vadd.f32 %v1691, 1.0
    %v1693 = vrcp.pop %v1692
    %v1694 = vmul.f32 1.0, %v1693
    %v1695 = vtanh.pop %v1688
    %v1696 = vmul.f32 %v1694, %v1432
    %1698 = vrot.lane.b32.xlu0 %v1695, 64
    %v1699 = vpop.permute.xlu0 %1698
    %v1701 = vmul.f32 %v1694, %v1699
    %1703 = vrot.lane.b32.xlu0 %v1701, 32
    %v1704 = vpop.permute.xlu0 %1703
    %v1706 = vadd.f32 %v1696, %v1704
    %v1707 = vtanh.pop %v1706
    %1709 = vrot.lane.b32.xlu0 %v1707, 64
    %v1710 = vpop.permute.xlu0 %1709
    %v1712 = vmul.f32 %v1694, %v1710
    %1714 = vrot.lane.b32.xlu0 %v1712, 32
    %v1715 = vpop.permute.xlu0 %1714
    %1717 = vst.msk [vmem:[#allocation2 + $0x28] sm:$0xff] %vm63, %v1715
    %s1718 = scalar_lea.vmem %s0, 48
    %v1719 = vld [vmem:[%s1718] sm:$0xff]
    %1720 = vmatprep.subr.mxu0 0.0
    %1721 = vmatpush1.msra.mxu0 0.0
    %1722 = vmatprep.subr.mxu0 0.0
    %1723 = vmatpush1.msra.mxu0 0.0
    %1724 = vmatprep.subr.mxu0 0.0
    %1725 = vmatpush1.msra.mxu0 0.0
    %1726 = vmatprep.subr.mxu0 0.0
    %1727 = vmatpush1.msra.mxu0 0.0
    %1728 = vmatprep.subr.mxu0 0.0
    %1729 = vmatpush1.msra.mxu0 0.0
    %1730 = vmatprep.subr.mxu0 0.0
    %1731 = vmatpush1.msra.mxu0 0.0
    %1732 = vmatprep.subr.mxu0 0.0
    %1733 = vmatpush1.msra.mxu0 0.0
    %1734 = vmatprep.subr.mxu0 0.0
    %1735 = vmatpush1.msra.mxu0 0.0
    %1736 = vmatprep.subr.mxu0 0.0
    %1737 = vmatpush1.msra.mxu0 0.0
    %1738 = vmatprep.subr.mxu0 0.0
    %1739 = vmatpush1.msra.mxu0 0.0
    %1740 = vmatprep.subr.mxu0 0.0
    %1741 = vmatpush1.msra.mxu0 0.0
    %1742 = vmatprep.subr.mxu0 0.0
    %1743 = vmatpush1.msra.mxu0 0.0
    %1744 = vmatprep.subr.mxu0 0.0
    %1745 = vmatpush1.msra.mxu0 %v40
    %1746 = vmatprep.subr.mxu0 0.0
    %1747 = vmatpush1.msra.mxu0 %v39
    %1748 = vmatprep.subr.mxu0 0.0
    %1749 = vmatpush1.msra.mxu0 %v38
    %1750 = vmatprep.subr.mxu0 0.0
    %1751 = vmatpush1.msra.mxu0 %v37
    %1752 = vmatprep.subr.mxu0 0.0
    %1753 = vmatpush2.msra.mxu0 0.0
    %1754 = vmatprep.subr.mxu0 0.0
    %1755 = vmatpush2.msra.mxu0 0.0
    %1756 = vmatprep.subr.mxu0 0.0
    %1757 = vmatpush2.msra.mxu0 0.0
    %1758 = vmatprep.subr.mxu0 0.0
    %1759 = vmatpush2.msra.mxu0 0.0
    %1760 = vmatprep.subr.mxu0 0.0
    %1761 = vmatpush2.msra.mxu0 0.0
    %1762 = vmatprep.subr.mxu0 0.0
    %1763 = vmatpush2.msra.mxu0 0.0
    %1764 = vmatprep.subr.mxu0 0.0
    %1765 = vmatpush2.msra.mxu0 0.0
    %1766 = vmatprep.subr.mxu0 0.0
    %1767 = vmatpush2.msra.mxu0 0.0
    %1768 = vmatprep.subr.mxu0 0.0
    %1769 = vmatpush2.msra.mxu0 0.0
    %1770 = vmatprep.subr.mxu0 0.0
    %1771 = vmatpush2.msra.mxu0 0.0
    %1772 = vmatprep.subr.mxu0 0.0
    %1773 = vmatpush2.msra.mxu0 0.0
    %1774 = vmatprep.subr.mxu0 0.0
    %1775 = vmatpush2.msra.mxu0 0.0
    %1776 = vmatprep.subr.mxu0 0.0
    %1777 = vmatpush2.msra.mxu0 0.0
    %1778 = vmatprep.subr.mxu0 0.0
    %1779 = vmatpush2.msra.mxu0 0.0
    %1780 = vmatprep.subr.mxu0 0.0
    %1781 = vmatpush2.msra.mxu0 0.0
    %1782 = vmatprep.subr.mxu0 0.0
    %1783 = vmatpush2.msra.mxu0 0.0
    %1784 = vmatprep.mubr.f32.mxu0 0.0
    %1785 = vmatmul.mubr.f32.gmra.mxu0 %v1616
    %v1786 = vpop.f32.mrf.mxu0
    %v1787 = vadd.f32 0.0, %v1786
    %v1788 = vpop.f32.mrf.mxu0
    %1789 = vdwg.mxu0
    %v1790 = vadd.f32 %v1719, %v1787
    %v1791 = vxor.u32 %v1790, 2147483648
    %v1792 = vmul.f32 %v1791, 1.442695
    %v1793 = vpow.pop %v1792
    %v1794 = vadd.f32 %v1793, 1.0
    %v1795 = vrcp.pop %v1794
    %v1796 = vmul.f32 1.0, %v1795
    %v1797 = vtanh.pop %v1790
    %v1798 = vmul.f32 %v1796, %v1534
    %1800 = vrot.lane.b32.xlu0 %v1797, 64
    %v1801 = vpop.permute.xlu0 %1800
    %v1803 = vmul.f32 %v1796, %v1801
    %1805 = vrot.lane.b32.xlu0 %v1803, 32
    %v1806 = vpop.permute.xlu0 %1805
    %v1808 = vadd.f32 %v1798, %v1806
    %v1809 = vtanh.pop %v1808
    %1811 = vrot.lane.b32.xlu0 %v1809, 64
    %v1812 = vpop.permute.xlu0 %1811
    %v1814 = vmul.f32 %v1796, %v1812
    %v1815 = vsel %vm63, %v1715, 0
    %1817 = vmatprep.subr.mxu0 0.0
    %1818 = vmatpush1.msra.mxu0 0.0
    %1819 = vmatprep.subr.mxu0 0.0
    %1820 = vmatpush1.msra.mxu0 0.0
    %1821 = vmatprep.subr.mxu0 0.0
    %1822 = vmatpush1.msra.mxu0 0.0
    %1823 = vmatprep.subr.mxu0 0.0
    %1824 = vmatpush1.msra.mxu0 0.0
    %1825 = vmatprep.subr.mxu0 0.0
    %1826 = vmatpush1.msra.mxu0 0.0
    %1827 = vmatprep.subr.mxu0 0.0
    %1828 = vmatpush1.msra.mxu0 0.0
    %1829 = vmatprep.subr.mxu0 0.0
    %1830 = vmatpush1.msra.mxu0 0.0
    %1831 = vmatprep.subr.mxu0 0.0
    %1832 = vmatpush1.msra.mxu0 0.0
    %1833 = vmatprep.subr.mxu0 0.0
    %1834 = vmatpush1.msra.mxu0 0.0
    %1835 = vmatprep.subr.mxu0 0.0
    %1836 = vmatpush1.msra.mxu0 0.0
    %1837 = vmatprep.subr.mxu0 0.0
    %1838 = vmatpush1.msra.mxu0 0.0
    %1839 = vmatprep.subr.mxu0 0.0
    %1840 = vmatpush1.msra.mxu0 0.0
    %1841 = vmatprep.subr.mxu0 0.0
    %1842 = vmatpush1.msra.mxu0 %v48
    %1843 = vmatprep.subr.mxu0 0.0
    %1844 = vmatpush1.msra.mxu0 %v47
    %1845 = vmatprep.subr.mxu0 0.0
    %1846 = vmatpush1.msra.mxu0 %v46
    %1847 = vmatprep.subr.mxu0 0.0
    %1848 = vmatpush1.msra.mxu0 %v45
    %1849 = vmatprep.subr.mxu0 0.0
    %1850 = vmatpush2.msra.mxu0 0.0
    %1851 = vmatprep.subr.mxu0 0.0
    %1852 = vmatpush2.msra.mxu0 0.0
    %1853 = vmatprep.subr.mxu0 0.0
    %1854 = vmatpush2.msra.mxu0 0.0
    %1855 = vmatprep.subr.mxu0 0.0
    %1856 = vmatpush2.msra.mxu0 0.0
    %1857 = vmatprep.subr.mxu0 0.0
    %1858 = vmatpush2.msra.mxu0 0.0
    %1859 = vmatprep.subr.mxu0 0.0
    %1860 = vmatpush2.msra.mxu0 0.0
    %1861 = vmatprep.subr.mxu0 0.0
    %1862 = vmatpush2.msra.mxu0 0.0
    %1863 = vmatprep.subr.mxu0 0.0
    %1864 = vmatpush2.msra.mxu0 0.0
    %1865 = vmatprep.subr.mxu0 0.0
    %1866 = vmatpush2.msra.mxu0 0.0
    %1867 = vmatprep.subr.mxu0 0.0
    %1868 = vmatpush2.msra.mxu0 0.0
    %1869 = vmatprep.subr.mxu0 0.0
    %1870 = vmatpush2.msra.mxu0 0.0
    %1871 = vmatprep.subr.mxu0 0.0
    %1872 = vmatpush2.msra.mxu0 0.0
    %1873 = vmatprep.subr.mxu0 0.0
    %1874 = vmatpush2.msra.mxu0 0.0
    %1875 = vmatprep.subr.mxu0 0.0
    %1876 = vmatpush2.msra.mxu0 0.0
    %1877 = vmatprep.subr.mxu0 0.0
    %1878 = vmatpush2.msra.mxu0 0.0
    %1879 = vmatprep.subr.mxu0 0.0
    %1880 = vmatpush2.msra.mxu0 0.0
    %1881 = vmatprep.mubr.f32.mxu0 0.0
    %1882 = vmatmul.mubr.f32.gmra.mxu0 %v1815
    %v1883 = vpop.f32.mrf.mxu0
    %v1884 = vadd.f32 0.0, %v1883
    %v1885 = vpop.f32.mrf.mxu0
    %1886 = vdwg.mxu0
    %1888 = vrot.lane.b32.xlu0 %v1814, 32
    %v1889 = vpop.permute.xlu0 %1888
    %v1890 = vsel %vm63, %v1889, 0
    %1892 = vmatprep.subr.mxu0 0.0
    %1893 = vmatpush1.msra.mxu0 0.0
    %1894 = vmatprep.subr.mxu0 0.0
    %1895 = vmatpush1.msra.mxu0 0.0
    %1896 = vmatprep.subr.mxu0 0.0
    %1897 = vmatpush1.msra.mxu0 0.0
    %1898 = vmatprep.subr.mxu0 0.0
    %1899 = vmatpush1.msra.mxu0 0.0
    %1900 = vmatprep.subr.mxu0 0.0
    %1901 = vmatpush1.msra.mxu0 0.0
    %1902 = vmatprep.subr.mxu0 0.0
    %1903 = vmatpush1.msra.mxu0 0.0
    %1904 = vmatprep.subr.mxu0 0.0
    %1905 = vmatpush1.msra.mxu0 0.0
    %1906 = vmatprep.subr.mxu0 0.0
    %1907 = vmatpush1.msra.mxu0 0.0
    %1908 = vmatprep.subr.mxu0 0.0
    %1909 = vmatpush1.msra.mxu0 0.0
    %1910 = vmatprep.subr.mxu0 0.0
    %1911 = vmatpush1.msra.mxu0 0.0
    %1912 = vmatprep.subr.mxu0 0.0
    %1913 = vmatpush1.msra.mxu0 0.0
    %1914 = vmatprep.subr.mxu0 0.0
    %1915 = vmatpush1.msra.mxu0 0.0
    %1916 = vmatprep.subr.mxu0 0.0
    %1917 = vmatpush1.msra.mxu0 %v44
    %1918 = vmatprep.subr.mxu0 0.0
    %1919 = vmatpush1.msra.mxu0 %v43
    %1920 = vmatprep.subr.mxu0 0.0
    %1921 = vmatpush1.msra.mxu0 %v42
    %1922 = vmatprep.subr.mxu0 0.0
    %1923 = vmatpush1.msra.mxu0 %v41
    %1924 = vmatprep.subr.mxu0 0.0
    %1925 = vmatpush2.msra.mxu0 0.0
    %1926 = vmatprep.subr.mxu0 0.0
    %1927 = vmatpush2.msra.mxu0 0.0
    %1928 = vmatprep.subr.mxu0 0.0
    %1929 = vmatpush2.msra.mxu0 0.0
    %1930 = vmatprep.subr.mxu0 0.0
    %1931 = vmatpush2.msra.mxu0 0.0
    %1932 = vmatprep.subr.mxu0 0.0
    %1933 = vmatpush2.msra.mxu0 0.0
    %1934 = vmatprep.subr.mxu0 0.0
    %1935 = vmatpush2.msra.mxu0 0.0
    %1936 = vmatprep.subr.mxu0 0.0
    %1937 = vmatpush2.msra.mxu0 0.0
    %1938 = vmatprep.subr.mxu0 0.0
    %1939 = vmatpush2.msra.mxu0 0.0
    %1940 = vmatprep.subr.mxu0 0.0
    %1941 = vmatpush2.msra.mxu0 0.0
    %1942 = vmatprep.subr.mxu0 0.0
    %1943 = vmatpush2.msra.mxu0 0.0
    %1944 = vmatprep.subr.mxu0 0.0
    %1945 = vmatpush2.msra.mxu0 0.0
    %1946 = vmatprep.subr.mxu0 0.0
    %1947 = vmatpush2.msra.mxu0 0.0
    %1948 = vmatprep.subr.mxu0 0.0
    %1949 = vmatpush2.msra.mxu0 0.0
    %1950 = vmatprep.subr.mxu0 0.0
    %1951 = vmatpush2.msra.mxu0 0.0
    %1952 = vmatprep.subr.mxu0 0.0
    %1953 = vmatpush2.msra.mxu0 0.0
    %1954 = vmatprep.subr.mxu0 0.0
    %1955 = vmatpush2.msra.mxu0 0.0
    %1956 = vmatprep.mubr.f32.mxu0 0.0
    %1957 = vmatmul.mubr.f32.gmra.mxu0 %v1890
    %v1958 = vpop.f32.mrf.mxu0
    %v1959 = vadd.f32 %v1884, %v1958
    %v1960 = vpop.f32.mrf.mxu0
    %1961 = vdwg.mxu0
    %v1962 = vadd.f32 %v1959, %v54
    %v1963 = vxor.u32 %v1962, 2147483648
    %v1964 = vmul.f32 %v1963, 1.442695
    %v1965 = vpow.pop %v1964
    %v1966 = vadd.f32 %v1965, 1.0
    %v1967 = vrcp.pop %v1966
    %v1968 = vmul.f32 1.0, %v1967
    %v1969 = vtanh.pop %v1962
    %v1970 = vmul.f32 %v1968, %v1706
    %1972 = vrot.lane.b32.xlu0 %v1969, 64
    %v1973 = vpop.permute.xlu0 %1972
    %v1975 = vmul.f32 %v1968, %v1973
    %1977 = vrot.lane.b32.xlu0 %v1975, 32
    %v1978 = vpop.permute.xlu0 %1977
    %v1980 = vadd.f32 %v1970, %v1978
    %v1981 = vtanh.pop %v1980
    %1983 = vrot.lane.b32.xlu0 %v1981, 64
    %v1984 = vpop.permute.xlu0 %1983
    %v1986 = vmul.f32 %v1968, %v1984
    %1988 = vrot.lane.b32.xlu0 %v1986, 32
    %v1989 = vpop.permute.xlu0 %1988
    %1991 = vst.msk [vmem:[#allocation2 + $0x30] sm:$0xff] %vm63, %v1989
    %s1992 = scalar_lea.vmem %s0, 56
    %v1993 = vld [vmem:[%s1992] sm:$0xff]
    %1994 = vmatprep.subr.mxu0 0.0
    %1995 = vmatpush1.msra.mxu0 0.0
    %1996 = vmatprep.subr.mxu0 0.0
    %1997 = vmatpush1.msra.mxu0 0.0
    %1998 = vmatprep.subr.mxu0 0.0
    %1999 = vmatpush1.msra.mxu0 0.0
    %2000 = vmatprep.subr.mxu0 0.0
    %2001 = vmatpush1.msra.mxu0 0.0
    %2002 = vmatprep.subr.mxu0 0.0
    %2003 = vmatpush1.msra.mxu0 0.0
    %2004 = vmatprep.subr.mxu0 0.0
    %2005 = vmatpush1.msra.mxu0 0.0
    %2006 = vmatprep.subr.mxu0 0.0
    %2007 = vmatpush1.msra.mxu0 0.0
    %2008 = vmatprep.subr.mxu0 0.0
    %2009 = vmatpush1.msra.mxu0 0.0
    %2010 = vmatprep.subr.mxu0 0.0
    %2011 = vmatpush1.msra.mxu0 0.0
    %2012 = vmatprep.subr.mxu0 0.0
    %2013 = vmatpush1.msra.mxu0 0.0
    %2014 = vmatprep.subr.mxu0 0.0
    %2015 = vmatpush1.msra.mxu0 0.0
    %2016 = vmatprep.subr.mxu0 0.0
    %2017 = vmatpush1.msra.mxu0 0.0
    %2018 = vmatprep.subr.mxu0 0.0
    %2019 = vmatpush1.msra.mxu0 %v40
    %2020 = vmatprep.subr.mxu0 0.0
    %2021 = vmatpush1.msra.mxu0 %v39
    %2022 = vmatprep.subr.mxu0 0.0
    %2023 = vmatpush1.msra.mxu0 %v38
    %2024 = vmatprep.subr.mxu0 0.0
    %2025 = vmatpush1.msra.mxu0 %v37
    %2026 = vmatprep.subr.mxu0 0.0
    %2027 = vmatpush2.msra.mxu0 0.0
    %2028 = vmatprep.subr.mxu0 0.0
    %2029 = vmatpush2.msra.mxu0 0.0
    %2030 = vmatprep.subr.mxu0 0.0
    %2031 = vmatpush2.msra.mxu0 0.0
    %2032 = vmatprep.subr.mxu0 0.0
    %2033 = vmatpush2.msra.mxu0 0.0
    %2034 = vmatprep.subr.mxu0 0.0
    %2035 = vmatpush2.msra.mxu0 0.0
    %2036 = vmatprep.subr.mxu0 0.0
    %2037 = vmatpush2.msra.mxu0 0.0
    %2038 = vmatprep.subr.mxu0 0.0
    %2039 = vmatpush2.msra.mxu0 0.0
    %2040 = vmatprep.subr.mxu0 0.0
    %2041 = vmatpush2.msra.mxu0 0.0
    %2042 = vmatprep.subr.mxu0 0.0
    %2043 = vmatpush2.msra.mxu0 0.0
    %2044 = vmatprep.subr.mxu0 0.0
    %2045 = vmatpush2.msra.mxu0 0.0
    %2046 = vmatprep.subr.mxu0 0.0
    %2047 = vmatpush2.msra.mxu0 0.0
    %2048 = vmatprep.subr.mxu0 0.0
    %2049 = vmatpush2.msra.mxu0 0.0
    %2050 = vmatprep.subr.mxu0 0.0
    %2051 = vmatpush2.msra.mxu0 0.0
    %2052 = vmatprep.subr.mxu0 0.0
    %2053 = vmatpush2.msra.mxu0 0.0
    %2054 = vmatprep.subr.mxu0 0.0
    %2055 = vmatpush2.msra.mxu0 0.0
    %2056 = vmatprep.subr.mxu0 0.0
    %2057 = vmatpush2.msra.mxu0 0.0
    %2058 = vmatprep.mubr.f32.mxu0 0.0
    %2059 = vmatmul.mubr.f32.gmra.mxu0 %v1890
    %v2060 = vpop.f32.mrf.mxu0
    %v2061 = vadd.f32 0.0, %v2060
    %v2062 = vpop.f32.mrf.mxu0
    %2063 = vdwg.mxu0
    %v2064 = vadd.f32 %v1993, %v2061
    %v2065 = vxor.u32 %v2064, 2147483648
    %v2066 = vmul.f32 %v2065, 1.442695
    %v2067 = vpow.pop %v2066
    %v2068 = vadd.f32 %v2067, 1.0
    %v2069 = vrcp.pop %v2068
    %v2070 = vmul.f32 1.0, %v2069
    %v2071 = vtanh.pop %v2064
    %v2072 = vmul.f32 %v2070, %v1808
    %2074 = vrot.lane.b32.xlu0 %v2071, 64
    %v2075 = vpop.permute.xlu0 %2074
    %v2077 = vmul.f32 %v2070, %v2075
    %2079 = vrot.lane.b32.xlu0 %v2077, 32
    %v2080 = vpop.permute.xlu0 %2079
    %v2082 = vadd.f32 %v2072, %v2080
    %v2083 = vtanh.pop %v2082
    %2085 = vrot.lane.b32.xlu0 %v2083, 64
    %v2086 = vpop.permute.xlu0 %2085
    %v2088 = vmul.f32 %v2070, %v2086
    %v2089 = vsel %vm63, %v1989, 0
    %2091 = vmatprep.subr.mxu0 0.0
    %2092 = vmatpush1.msra.mxu0 0.0
    %2093 = vmatprep.subr.mxu0 0.0
    %2094 = vmatpush1.msra.mxu0 0.0
    %2095 = vmatprep.subr.mxu0 0.0
    %2096 = vmatpush1.msra.mxu0 0.0
    %2097 = vmatprep.subr.mxu0 0.0
    %2098 = vmatpush1.msra.mxu0 0.0
    %2099 = vmatprep.subr.mxu0 0.0
    %2100 = vmatpush1.msra.mxu0 0.0
    %2101 = vmatprep.subr.mxu0 0.0
    %2102 = vmatpush1.msra.mxu0 0.0
    %2103 = vmatprep.subr.mxu0 0.0
    %2104 = vmatpush1.msra.mxu0 0.0
    %2105 = vmatprep.subr.mxu0 0.0
    %2106 = vmatpush1.msra.mxu0 0.0
    %2107 = vmatprep.subr.mxu0 0.0
    %2108 = vmatpush1.msra.mxu0 0.0
    %2109 = vmatprep.subr.mxu0 0.0
    %2110 = vmatpush1.msra.mxu0 0.0
    %2111 = vmatprep.subr.mxu0 0.0
    %2112 = vmatpush1.msra.mxu0 0.0
    %2113 = vmatprep.subr.mxu0 0.0
    %2114 = vmatpush1.msra.mxu0 0.0
    %2115 = vmatprep.subr.mxu0 0.0
    %2116 = vmatpush1.msra.mxu0 %v48
    %2117 = vmatprep.subr.mxu0 0.0
    %2118 = vmatpush1.msra.mxu0 %v47
    %2119 = vmatprep.subr.mxu0 0.0
    %2120 = vmatpush1.msra.mxu0 %v46
    %2121 = vmatprep.subr.mxu0 0.0
    %2122 = vmatpush1.msra.mxu0 %v45
    %2123 = vmatprep.subr.mxu0 0.0
    %2124 = vmatpush2.msra.mxu0 0.0
    %2125 = vmatprep.subr.mxu0 0.0
    %2126 = vmatpush2.msra.mxu0 0.0
    %2127 = vmatprep.subr.mxu0 0.0
    %2128 = vmatpush2.msra.mxu0 0.0
    %2129 = vmatprep.subr.mxu0 0.0
    %2130 = vmatpush2.msra.mxu0 0.0
    %2131 = vmatprep.subr.mxu0 0.0
    %2132 = vmatpush2.msra.mxu0 0.0
    %2133 = vmatprep.subr.mxu0 0.0
    %2134 = vmatpush2.msra.mxu0 0.0
    %2135 = vmatprep.subr.mxu0 0.0
    %2136 = vmatpush2.msra.mxu0 0.0
    %2137 = vmatprep.subr.mxu0 0.0
    %2138 = vmatpush2.msra.mxu0 0.0
    %2139 = vmatprep.subr.mxu0 0.0
    %2140 = vmatpush2.msra.mxu0 0.0
    %2141 = vmatprep.subr.mxu0 0.0
    %2142 = vmatpush2.msra.mxu0 0.0
    %2143 = vmatprep.subr.mxu0 0.0
    %2144 = vmatpush2.msra.mxu0 0.0
    %2145 = vmatprep.subr.mxu0 0.0
    %2146 = vmatpush2.msra.mxu0 0.0
    %2147 = vmatprep.subr.mxu0 0.0
    %2148 = vmatpush2.msra.mxu0 0.0
    %2149 = vmatprep.subr.mxu0 0.0
    %2150 = vmatpush2.msra.mxu0 0.0
    %2151 = vmatprep.subr.mxu0 0.0
    %2152 = vmatpush2.msra.mxu0 0.0
    %2153 = vmatprep.subr.mxu0 0.0
    %2154 = vmatpush2.msra.mxu0 0.0
    %2155 = vmatprep.mubr.f32.mxu0 0.0
    %2156 = vmatmul.mubr.f32.gmra.mxu0 %v2089
    %v2157 = vpop.f32.mrf.mxu0
    %v2158 = vadd.f32 0.0, %v2157
    %v2159 = vpop.f32.mrf.mxu0
    %2160 = vdwg.mxu0
    %2162 = vrot.lane.b32.xlu0 %v2088, 32
    %v2163 = vpop.permute.xlu0 %2162
    %v2164 = vsel %vm63, %v2163, 0
    %2166 = vmatprep.subr.mxu0 0.0
    %2167 = vmatpush1.msra.mxu0 0.0
    %2168 = vmatprep.subr.mxu0 0.0
    %2169 = vmatpush1.msra.mxu0 0.0
    %2170 = vmatprep.subr.mxu0 0.0
    %2171 = vmatpush1.msra.mxu0 0.0
    %2172 = vmatprep.subr.mxu0 0.0
    %2173 = vmatpush1.msra.mxu0 0.0
    %2174 = vmatprep.subr.mxu0 0.0
    %2175 = vmatpush1.msra.mxu0 0.0
    %2176 = vmatprep.subr.mxu0 0.0
    %2177 = vmatpush1.msra.mxu0 0.0
    %2178 = vmatprep.subr.mxu0 0.0
    %2179 = vmatpush1.msra.mxu0 0.0
    %2180 = vmatprep.subr.mxu0 0.0
    %2181 = vmatpush1.msra.mxu0 0.0
    %2182 = vmatprep.subr.mxu0 0.0
    %2183 = vmatpush1.msra.mxu0 0.0
    %2184 = vmatprep.subr.mxu0 0.0
    %2185 = vmatpush1.msra.mxu0 0.0
    %2186 = vmatprep.subr.mxu0 0.0
    %2187 = vmatpush1.msra.mxu0 0.0
    %2188 = vmatprep.subr.mxu0 0.0
    %2189 = vmatpush1.msra.mxu0 0.0
    %2190 = vmatprep.subr.mxu0 0.0
    %2191 = vmatpush1.msra.mxu0 %v44
    %2192 = vmatprep.subr.mxu0 0.0
    %2193 = vmatpush1.msra.mxu0 %v43
    %2194 = vmatprep.subr.mxu0 0.0
    %2195 = vmatpush1.msra.mxu0 %v42
    %2196 = vmatprep.subr.mxu0 0.0
    %2197 = vmatpush1.msra.mxu0 %v41
    %2198 = vmatprep.subr.mxu0 0.0
    %2199 = vmatpush2.msra.mxu0 0.0
    %2200 = vmatprep.subr.mxu0 0.0
    %2201 = vmatpush2.msra.mxu0 0.0
    %2202 = vmatprep.subr.mxu0 0.0
    %2203 = vmatpush2.msra.mxu0 0.0
    %2204 = vmatprep.subr.mxu0 0.0
    %2205 = vmatpush2.msra.mxu0 0.0
    %2206 = vmatprep.subr.mxu0 0.0
    %2207 = vmatpush2.msra.mxu0 0.0
    %2208 = vmatprep.subr.mxu0 0.0
    %2209 = vmatpush2.msra.mxu0 0.0
    %2210 = vmatprep.subr.mxu0 0.0
    %2211 = vmatpush2.msra.mxu0 0.0
    %2212 = vmatprep.subr.mxu0 0.0
    %2213 = vmatpush2.msra.mxu0 0.0
    %2214 = vmatprep.subr.mxu0 0.0
    %2215 = vmatpush2.msra.mxu0 0.0
    %2216 = vmatprep.subr.mxu0 0.0
    %2217 = vmatpush2.msra.mxu0 0.0
    %2218 = vmatprep.subr.mxu0 0.0
    %2219 = vmatpush2.msra.mxu0 0.0
    %2220 = vmatprep.subr.mxu0 0.0
    %2221 = vmatpush2.msra.mxu0 0.0
    %2222 = vmatprep.subr.mxu0 0.0
    %2223 = vmatpush2.msra.mxu0 0.0
    %2224 = vmatprep.subr.mxu0 0.0
    %2225 = vmatpush2.msra.mxu0 0.0
    %2226 = vmatprep.subr.mxu0 0.0
    %2227 = vmatpush2.msra.mxu0 0.0
    %2228 = vmatprep.subr.mxu0 0.0
    %2229 = vmatpush2.msra.mxu0 0.0
    %2230 = vmatprep.mubr.f32.mxu0 0.0
    %2231 = vmatmul.mubr.f32.gmra.mxu0 %v2164
    %v2232 = vpop.f32.mrf.mxu0
    %v2233 = vadd.f32 %v2158, %v2232
    %v2234 = vpop.f32.mrf.mxu0
    %2235 = vdwg.mxu0
    %v2236 = vadd.f32 %v2233, %v54
    %v2237 = vxor.u32 %v2236, 2147483648
    %v2238 = vmul.f32 %v2237, 1.442695
    %v2239 = vpow.pop %v2238
    %v2240 = vadd.f32 %v2239, 1.0
    %v2241 = vrcp.pop %v2240
    %v2242 = vmul.f32 1.0, %v2241
    %v2243 = vtanh.pop %v2236
    %v2244 = vmul.f32 %v2242, %v1980
    %2246 = vrot.lane.b32.xlu0 %v2243, 64
    %v2247 = vpop.permute.xlu0 %2246
    %v2249 = vmul.f32 %v2242, %v2247
    %2251 = vrot.lane.b32.xlu0 %v2249, 32
    %v2252 = vpop.permute.xlu0 %2251
    %v2254 = vadd.f32 %v2244, %v2252
    %v2255 = vtanh.pop %v2254
    %2257 = vrot.lane.b32.xlu0 %v2255, 64
    %v2258 = vpop.permute.xlu0 %2257
    %v2260 = vmul.f32 %v2242, %v2258
    %2262 = vrot.lane.b32.xlu0 %v2260, 32
    %v2263 = vpop.permute.xlu0 %2262
    %2265 = vst.msk [vmem:[#allocation2 + $0x38] sm:$0xff] %vm63, %v2263
    %2267 = vst.msk [vmem:[#allocation5] sm:$0xff] %vm63, %v2163
    %s2268 = scalar_lea.vmem [#allocation5], 8
    %2269 = vst.msk [vmem:[%s2268] sm:$0xff] %vm63, %v2263
    %2271 = vrot.lane.b32.xlu0 %v2082, 96
    %v2272 = vpop.permute.xlu0 %2271
    %2274 = vst.msk [vmem:[#allocation7] sm:$0xff] %vm63, %v2272
    %2276 = vrot.lane.b32.xlu0 %v2254, 96
    %v2277 = vpop.permute.xlu0 %2276
    %s2279 = scalar_lea.vmem [#allocation7], 8
    %2280 = vst.msk [vmem:[%s2279] sm:$0xff] %vm63, %v2277
    %v2281 = vld [vmem:[#allocation2] sm:$0xff]
    %v2282 = vld [vmem:[#allocation2 + $0x8] sm:$0xff]
    %v2283 = vld [vmem:[#allocation2 + $0x10] sm:$0xff]
    %v2284 = vld [vmem:[#allocation2 + $0x18] sm:$0xff]
    %v2285 = vld [vmem:[#allocation2 + $0x20] sm:$0xff]
    %v2286 = vld [vmem:[#allocation2 + $0x28] sm:$0xff]
    %v2287 = vld [vmem:[#allocation2 + $0x30] sm:$0xff]
    %v2288 = vld [vmem:[#allocation2 + $0x38] sm:$0xff]
    %v2289 = vld [vmem:[%s7] sm:$0xff]
    %v2290 = vld [vmem:[%s7 + $0x8] sm:$0xff]
    %v2291 = vld [vmem:[%s7 + $0x10] sm:$0xff]
    %v2292 = vld [vmem:[%s7 + $0x18] sm:$0xff]
    %v2293 = vld [vmem:[%s8] sm:$0x1]
    %v2295 = vlaneseq
    %v2296 = vshrl.u32 %v2295, 7
    %v2297 = vsub.s32 0, %v2296
    %v2298 = vrot.slane %v2293, %v2297
    %v2301 = vsel %vm63, %v2281, 0
    %v2304 = vsel %vm63, %v2282, 0
    %v2307 = vsel %vm63, %v2283, 0
    %v2310 = vsel %vm63, %v2284, 0
    %v2313 = vsel %vm63, %v2285, 0
    %v2316 = vsel %vm63, %v2286, 0
    %v2319 = vsel %vm63, %v2287, 0
    %v2322 = vsel %vm63, %v2288, 0
    %2324 = vmatprep.subr.mxu0 0.0
    %2325 = vmatpush1.msra.mxu0 0.0
    %2326 = vmatprep.subr.mxu0 0.0
    %2327 = vmatpush1.msra.mxu0 0.0
    %2328 = vmatprep.subr.mxu0 0.0
    %2329 = vmatpush1.msra.mxu0 0.0
    %2330 = vmatprep.subr.mxu0 0.0
    %2331 = vmatpush1.msra.mxu0 0.0
    %2332 = vmatprep.subr.mxu0 0.0
    %2333 = vmatpush1.msra.mxu0 0.0
    %2334 = vmatprep.subr.mxu0 0.0
    %2335 = vmatpush1.msra.mxu0 0.0
    %2336 = vmatprep.subr.mxu0 0.0
    %2337 = vmatpush1.msra.mxu0 0.0
    %2338 = vmatprep.subr.mxu0 0.0
    %2339 = vmatpush1.msra.mxu0 0.0
    %2340 = vmatprep.subr.mxu0 0.0
    %2341 = vmatpush1.msra.mxu0 0.0
    %2342 = vmatprep.subr.mxu0 0.0
    %2343 = vmatpush1.msra.mxu0 0.0
    %2344 = vmatprep.subr.mxu0 0.0
    %2345 = vmatpush1.msra.mxu0 0.0
    %2346 = vmatprep.subr.mxu0 0.0
    %2347 = vmatpush1.msra.mxu0 0.0
    %2348 = vmatprep.subr.mxu0 0.0
    %2349 = vmatpush1.msra.mxu0 %v2292
    %2350 = vmatprep.subr.mxu0 0.0
    %2351 = vmatpush1.msra.mxu0 %v2291
    %2352 = vmatprep.subr.mxu0 0.0
    %2353 = vmatpush1.msra.mxu0 %v2290
    %2354 = vmatprep.subr.mxu0 0.0
    %2355 = vmatpush1.msra.mxu0 %v2289
    %2356 = vmatprep.subr.mxu0 0.0
    %2357 = vmatpush2.msra.mxu0 0.0
    %2358 = vmatprep.subr.mxu0 0.0
    %2359 = vmatpush2.msra.mxu0 0.0
    %2360 = vmatprep.subr.mxu0 0.0
    %2361 = vmatpush2.msra.mxu0 0.0
    %2362 = vmatprep.subr.mxu0 0.0
    %2363 = vmatpush2.msra.mxu0 0.0
    %2364 = vmatprep.subr.mxu0 0.0
    %2365 = vmatpush2.msra.mxu0 0.0
    %2366 = vmatprep.subr.mxu0 0.0
    %2367 = vmatpush2.msra.mxu0 0.0
    %2368 = vmatprep.subr.mxu0 0.0
    %2369 = vmatpush2.msra.mxu0 0.0
    %2370 = vmatprep.subr.mxu0 0.0
    %2371 = vmatpush2.msra.mxu0 0.0
    %2372 = vmatprep.subr.mxu0 0.0
    %2373 = vmatpush2.msra.mxu0 0.0
    %2374 = vmatprep.subr.mxu0 0.0
    %2375 = vmatpush2.msra.mxu0 0.0
    %2376 = vmatprep.subr.mxu0 0.0
    %2377 = vmatpush2.msra.mxu0 0.0
    %2378 = vmatprep.subr.mxu0 0.0
    %2379 = vmatpush2.msra.mxu0 0.0
    %2380 = vmatprep.subr.mxu0 0.0
    %2381 = vmatpush2.msra.mxu0 0.0
    %2382 = vmatprep.subr.mxu0 0.0
    %2383 = vmatpush2.msra.mxu0 0.0
    %2384 = vmatprep.subr.mxu0 0.0
    %2385 = vmatpush2.msra.mxu0 0.0
    %2386 = vmatprep.subr.mxu0 0.0
    %2387 = vmatpush2.msra.mxu0 0.0
    %2388 = vmatprep.mubr.f32.mxu0 0.0
    %2389 = vmatmul.mubr.f32.gmra.mxu0 %v2301
    %v2390 = vpop.f32.mrf.mxu0
    %v2391 = vadd.f32 %v2298, %v2390
    %v2392 = vpop.f32.mrf.mxu0
    %2393 = vmatprep.mubr.f32.mxu0 0.0
    %2394 = vmatmul.mubr.f32.gmra.mxu0 %v2304
    %v2395 = vpop.f32.mrf.mxu0
    %v2396 = vadd.f32 %v2298, %v2395
    %v2397 = vpop.f32.mrf.mxu0
    %2398 = vmatprep.mubr.f32.mxu0 0.0
    %2399 = vmatmul.mubr.f32.gmra.mxu0 %v2307
    %v2400 = vpop.f32.mrf.mxu0
    %v2401 = vadd.f32 %v2298, %v2400
    %v2402 = vpop.f32.mrf.mxu0
    %2403 = vmatprep.mubr.f32.mxu0 0.0
    %2404 = vmatmul.mubr.f32.gmra.mxu0 %v2310
    %v2405 = vpop.f32.mrf.mxu0
    %v2406 = vadd.f32 %v2298, %v2405
    %v2407 = vpop.f32.mrf.mxu0
    %2408 = vmatprep.mubr.f32.mxu0 0.0
    %2409 = vmatmul.mubr.f32.gmra.mxu0 %v2313
    %v2410 = vpop.f32.mrf.mxu0
    %v2411 = vadd.f32 %v2298, %v2410
    %v2412 = vpop.f32.mrf.mxu0
    %2413 = vmatprep.mubr.f32.mxu0 0.0
    %2414 = vmatmul.mubr.f32.gmra.mxu0 %v2316
    %v2415 = vpop.f32.mrf.mxu0
    %v2416 = vadd.f32 %v2298, %v2415
    %v2417 = vpop.f32.mrf.mxu0
    %2418 = vmatprep.mubr.f32.mxu0 0.0
    %2419 = vmatmul.mubr.f32.gmra.mxu0 %v2319
    %v2420 = vpop.f32.mrf.mxu0
    %v2421 = vadd.f32 %v2298, %v2420
    %v2422 = vpop.f32.mrf.mxu0
    %2423 = vmatprep.mubr.f32.mxu0 0.0
    %2424 = vmatmul.mubr.f32.gmra.mxu0 %v2322
    %v2425 = vpop.f32.mrf.mxu0
    %v2426 = vadd.f32 %v2298, %v2425
    %v2427 = vpop.f32.mrf.mxu0
    %2428 = vdwg.mxu0
    %2429 = vst [vmem:[#allocation3] sm:$0xff] %v2391
    %2430 = vst [vmem:[#allocation3 + $0x8] sm:$0xff] %v2396
    %2431 = vst [vmem:[#allocation3 + $0x10] sm:$0xff] %v2401
    %2432 = vst [vmem:[#allocation3 + $0x18] sm:$0xff] %v2406
    %2433 = vst [vmem:[#allocation3 + $0x20] sm:$0xff] %v2411
    %2434 = vst [vmem:[#allocation3 + $0x28] sm:$0xff] %v2416
    %2435 = vst [vmem:[#allocation3 + $0x30] sm:$0xff] %v2421
    %2436 = vst [vmem:[#allocation3 + $0x38] sm:$0xff] %v2426
    // Predicated region
    $region38: #{decoder_decode.1} parent=1 // pred_check
      _
    $region39: #{decoder_decode.1} parent=1 // pred_check_branch
      %2438 = sbr.rel (0) target = $region41
    $region40: #{decoder_decode.1} parent=1 // pred_region
      %s2440 = ssub.s32 1024, 1024
      %2441 = vsyncadd [#allocation4], %s2440
      %s2442 = sshll.u32 [#allocation3], 4
      %s2443 = int_to_ptr.vmem [resolvable:$true] %s2442
      %2448 = dma.vmem_to_hbm [thread:$0]  %s2443, 1024, %s9, [#allocation4], 128, 128, 8
    $region41: #{decoder_decode.1} parent=1 // pred_fallthru
      _
    // Predicated region
    $region42: #{decoder_decode.1} parent=1 // pred_check
      _
    $region43: #{decoder_decode.1} parent=1 // pred_check_branch
      %2450 = sbr.rel (0) target = $region45
    $region44: #{decoder_decode.1} parent=1 // pred_region
      %s2452 = ssub.s32 256, 256
      %2453 = vsyncadd [#allocation6], %s2452
      %s2454 = sshll.u32 [#allocation5], 4
      %s2455 = int_to_ptr.vmem [resolvable:$true] %s2454
      %2460 = dma.vmem_to_hbm [thread:$0]  %s2455, 256, %s10, [#allocation6], 128, 128, 8
    $region45: #{decoder_decode.1} parent=1 // pred_fallthru
      _
    // Predicated region
    $region46: #{decoder_decode.1} parent=1 // pred_check
      _
    $region47: #{decoder_decode.1} parent=1 // pred_check_branch
      %2462 = sbr.rel (0) target = $region49
    $region48: #{decoder_decode.1} parent=1 // pred_region
      %s2464 = ssub.s32 256, 256
      %2465 = vsyncadd [#allocation6], %s2464
      %s2466 = sshll.u32 [#allocation7], 4
      %s2467 = int_to_ptr.vmem [resolvable:$true] %s2466
      %2472 = dma.vmem_to_hbm [thread:$0]  %s2467, 256, %s11, [#allocation6], 128, 128, 8
    $region49: #{decoder_decode.1} parent=1 // pred_fallthru
      _
    // Predicated region
    $region50: #{decoder_decode.1} parent=1 // pred_check
      _
    $region51: #{decoder_decode.1} parent=1 // pred_check_branch
      %2474 = sbr.rel (0) target = $region53
    $region52: #{decoder_decode.1} parent=1 // pred_region
      %2475 = dma.done [#allocation4], 1024
    $region53: #{decoder_decode.1} parent=1 // pred_fallthru
      _
    // Predicated region
    $region54: #{decoder_decode.1} parent=1 // pred_check
      _
    $region55: #{decoder_decode.1} parent=1 // pred_check_branch
      %2477 = sbr.rel (0) target = $region57
    $region56: #{decoder_decode.1} parent=1 // pred_region
      %2478 = dma.done [#allocation6], 256
    $region57: #{decoder_decode.1} parent=1 // pred_fallthru
      _
    // Predicated region
    $region58: #{decoder_decode.1} parent=1 // pred_check
      _
    $region59: #{decoder_decode.1} parent=1 // pred_check_branch
      %2480 = sbr.rel (0) target = $region61
    $region60: #{decoder_decode.1} parent=1 // pred_region
      %2481 = dma.done [#allocation6], 256
    $region61: #{decoder_decode.1} parent=1 // pred_fallthru
      _
    %2482 = vsyncpa [#allocation4], 1
    %2483 = vsyncpa [#allocation6], 1

</llo_original>
